<compile_context>
chip_gen: v5e
topology: v5e:2x2
jax: 0.10.0
libtpu: 0.0.40
codegen_flags: <defaults>
</compile_context>

<pallas_src>
import jax
import jax.numpy as jnp
from jax import lax
from jax.experimental import pallas as pl
from jax.experimental.pallas import tpu as pltpu

BN_EPS = 1e-5
VMEM_LIMIT_BYTES = 32 * 1024 * 1024   # scoped-VMEM request (safe on v5e/v6e/v7x)
VMEM_TILE_BUDGET = 20 * 1024 * 1024   # budget used by tile-size selection


def _round_up(x, m):
    return ((x + m - 1) // m) * m


def _pixel_tile(p, bytes_per_lane):
    # Lane (pixel) tile: as large as the VMEM budget allows, capped at 2048,
    # but also aiming for >=8 grid steps when p is big enough so both v7x
    # TensorCores get pipelined work (and the i+1 prefetch overlaps compute).
    cap = VMEM_TILE_BUDGET // max(bytes_per_lane, 1)
    cap = max(128, min(2048, (cap // 128) * 128))
    want = max(128, ((p // 8) // 128) * 128)
    return min(cap, want, _round_up(p, 128))


# ---------------- Pallas kernels (channel-major: (channels, pixels)) ----------------

def _stem_kernel(w_ref, x_ref, s_ref, t_ref, o_ref):
    # o = relu((W @ patches) * scale + shift)   -- 7x7 stem conv (im2col) + BN + ReLU
    y = jnp.dot(w_ref[...], x_ref[...], preferred_element_type=jnp.float32)
    o_ref[...] = jnp.maximum(y * s_ref[...] + t_ref[...], 0.0).astype(o_ref.dtype)


def _make_dense_block_kernel(num_layers, c0, g):
    # One WHOLE dense block fused.  The growing feature slab lives in a VMEM
    # scratch (c_final, tp) in f32; layer j reads rows [0, c0+j*g) and writes
    # its g new rows in place.  Only the final slab leaves VMEM.
    def kernel(x_ref, *rest):
        o_ref, slab = rest[-2], rest[-1]
        prm = rest[:-2]
        slab[0:c0, :] = x_ref[...].astype(jnp.float32)
        for j in range(num_layers):
            s0, t0, w0, s1, t1, w1, b1 = prm[7 * j:7 * j + 7]
            cin = c0 + j * g
            # bn0 -> relu -> 1x1 conv (its bias folded into bn1's shift)
            h0 = jnp.maximum(slab[0:cin, :] * s0[...] + t0[...], 0.0)
            z = jnp.dot(w0[...], h0.astype(jnp.bfloat16),
                        preferred_element_type=jnp.float32)
            # bn1 -> relu -> 1x1 conv (+ bias)
            h1 = jnp.maximum(z * s1[...] + t1[...], 0.0)
            y = jnp.dot(w1[...], h1.astype(jnp.bfloat16),
                        preferred_element_type=jnp.float32) + b1[...]
            slab[cin:cin + g, :] = y
        o_ref[...] = slab[...].astype(o_ref.dtype)
    return kernel


def _transition_kernel(x_ref, s_ref, t_ref, w_ref, o_ref):
    # o = W @ relu(bn(x))    (transition 1x1 conv, no bias)
    h = jnp.maximum(x_ref[...].astype(jnp.float32) * s_ref[...] + t_ref[...], 0.0)
    o_ref[...] = jnp.dot(w_ref[...], h.astype(jnp.bfloat16),
                         preferred_element_type=jnp.float32).astype(o_ref.dtype)


def _make_head_kernel(inv_hw):
    # relu(bn(x)) -> global avg pool (matmul against a 0/1 membership matrix,
    # 1/hw applied in f32) accumulated in VMEM across pixel tiles -> classifier.
    def kernel(x_ref, s_ref, t_ref, pool_ref, w_ref, b_ref, o_ref, acc_ref):
        @pl.when(pl.program_id(0) == 0)
        def _():
            acc_ref[...] = jnp.zeros_like(acc_ref)

        h = jnp.maximum(x_ref[...].astype(jnp.float32) * s_ref[...] + t_ref[...], 0.0)
        acc_ref[...] += jnp.dot(h.astype(jnp.bfloat16), pool_ref[...],
                                preferred_element_type=jnp.float32)

        @pl.when(pl.program_id(0) == pl.num_programs(0) - 1)
        def _():
            pooled = acc_ref[...] * inv_hw
            o_ref[...] = (jnp.dot(w_ref[...], pooled.astype(jnp.bfloat16),
                                  preferred_element_type=jnp.float32) + b_ref[...])
    return kernel


# ---------------- Pallas wrappers ----------------

def _cparams(parallel=True):
    return pltpu.CompilerParams(
        dimension_semantics=("parallel",) if parallel else ("arbitrary",),
        vmem_limit_bytes=VMEM_LIMIT_BYTES)


def stem_conv_bn_relu(patches, w, s, t, tp):
    kp, p_pad = patches.shape
    cout = w.shape[0]
    return pl.pallas_call(
        _stem_kernel,
        out_shape=jax.ShapeDtypeStruct((cout, p_pad), jnp.bfloat16),
        grid=(p_pad // tp,),
        in_specs=[
            pl.BlockSpec((cout, kp), lambda i: (0, 0)),
            pl.BlockSpec((kp, tp), lambda i: (0, i)),
            pl.BlockSpec((cout, 1), lambda i: (0, 0)),
            pl.BlockSpec((cout, 1), lambda i: (0, 0)),
        ],
        out_specs=pl.BlockSpec((cout, tp), lambda i: (0, i)),
        compiler_params=_cparams(True),
    )(w, patches, s, t)


def dense_block(slab, layers, c0, g, tp):
    # NOTE: bf16 slab blocks assume c0 and c_final are multiples of 16 (true for
    # this toy config; standard DenseNet configs with odd growth rates are not
    # guaranteed to satisfy it).
    _, p_pad = slab.shape
    num_layers = len(layers)
    c_final = c0 + num_layers * g
    mid = layers[0]['w0'].shape[0]
    in_specs = [pl.BlockSpec((c0, tp), lambda i: (0, i))]
    args = [slab]
    for j, layer in enumerate(layers):
        cin = c0 + j * g
        for name, shape in (('s0', (cin, 1)), ('t0', (cin, 1)), ('w0', (mid, cin)),
                            ('s1', (mid, 1)), ('t1', (mid, 1)), ('w1', (g, mid)),
                            ('b1', (g, 1))):
            in_specs.append(pl.BlockSpec(shape, lambda i: (0, 0)))
            args.append(layer[name])
    return pl.pallas_call(
        _make_dense_block_kernel(num_layers, c0, g),
        out_shape=jax.ShapeDtypeStruct((c_final, p_pad), jnp.bfloat16),
        grid=(p_pad // tp,),
        in_specs=in_specs,
        out_specs=pl.BlockSpec((c_final, tp), lambda i: (0, i)),
        scratch_shapes=[pltpu.VMEM((c_final, tp), jnp.float32)],
        compiler_params=_cparams(True),
    )(*args)


def transition_conv(slab, trans, cin, tp):
    _, p_pad = slab.shape
    cout = trans['w'].shape[0]
    return pl.pallas_call(
        _transition_kernel,
        out_shape=jax.ShapeDtypeStruct((cout, p_pad), jnp.bfloat16),
        grid=(p_pad // tp,),
        in_specs=[
            pl.BlockSpec((cin, tp), lambda i: (0, i)),
            pl.BlockSpec((cin, 1), lambda i: (0, 0)),
            pl.BlockSpec((cin, 1), lambda i: (0, 0)),
            pl.BlockSpec((cout, cin), lambda i: (0, 0)),
        ],
        out_specs=pl.BlockSpec((cout, tp), lambda i: (0, i)),
        compiler_params=_cparams(True),
    )(slab, trans['s'], trans['t'], trans['w'])


def head(x2d, s, t, pool, w_cls, b_cls, tp, inv_hw):
    c, p_pad = x2d.shape
    n = pool.shape[1]
    nc = w_cls.shape[0]
    logits_t = pl.pallas_call(
        _make_head_kernel(inv_hw),
        out_shape=jax.ShapeDtypeStruct((nc, n), jnp.float32),
        grid=(p_pad // tp,),
        in_specs=[
            pl.BlockSpec((c, tp), lambda i: (0, i)),
            pl.BlockSpec((c, 1), lambda i: (0, 0)),
            pl.BlockSpec((c, 1), lambda i: (0, 0)),
            pl.BlockSpec((tp, n), lambda i: (i, 0)),
            pl.BlockSpec((nc, c), lambda i: (0, 0)),
            pl.BlockSpec((nc, 1), lambda i: (0, 0)),
        ],
        out_specs=pl.BlockSpec((nc, n), lambda i: (0, 0)),
        scratch_shapes=[pltpu.VMEM((c, n), jnp.float32)],
        compiler_params=_cparams(False),
    )(x2d, s, t, pool, w_cls, b_cls)
    return logits_t.T


# ---------------- parameter construction (deterministic) ----------------

def bn_fold(c):
    # Inference-mode BatchNorm folded into a per-channel affine (scale, shift).
    gamma = jnp.ones((c,), jnp.float32)
    beta = jnp.zeros((c,), jnp.float32)
    mean = jnp.zeros((c,), jnp.float32)
    var = jnp.ones((c,), jnp.float32)
    scale = gamma * lax.rsqrt(var + BN_EPS)
    shift = beta - mean * scale
    return scale, shift


def kaiming_conv(key, cout, cin, kh, kw):
    fan_in = cin * kh * kw
    std = (2.0 / fan_in) ** 0.5
    return jax.random.normal(key, (cout, cin, kh, kw), jnp.float32) * std


def conv_bias(key, cout, fan_in):
    bound = 1.0 / fan_in ** 0.5
    return jax.random.uniform(key, (cout,), jnp.float32, -bound, bound)


def init_params(key, growth_rate, block_config, init_features, bn_size, num_classes):
    keys = iter(jax.random.split(key, 512))
    params = {}

    # stem: (cout, cin*7*7) weight, K ordered (cin, kh, kw) to match the im2col
    # tap order, zero-padded to a lane-aligned 256, bf16.
    w = kaiming_conv(next(keys), init_features, 3, 7, 7).reshape(init_features, 3 * 49)
    k_pad = _round_up(3 * 49, 128)
    params['stem_w'] = jnp.pad(w, ((0, 0), (0, k_pad - 3 * 49))).astype(jnp.bfloat16)
    s, t = bn_fold(init_features)
    params['stem_s'], params['stem_t'] = s.reshape(-1, 1), t.reshape(-1, 1)

    num_feat = init_features
    blocks = []
    for i, num_layers in enumerate(block_config):
        layers = []
        for j in range(num_layers):
            cin = num_feat + j * growth_rate
            mid = bn_size * growth_rate
            s0, t0 = bn_fold(cin)
            w0 = kaiming_conv(next(keys), mid, cin, 1, 1)[:, :, 0, 0]            # (mid, cin)
            b0 = conv_bias(next(keys), mid, cin)
            s1, t1 = bn_fold(mid)
            t1 = t1 + s1 * b0          # fold conv0's bias into the following BN's shift
            w1 = kaiming_conv(next(keys), growth_rate, mid, 1, 1)[:, :, 0, 0]    # (g, mid)
            b1 = conv_bias(next(keys), growth_rate, mid)
            layers.append({
                's0': s0.reshape(-1, 1), 't0': t0.reshape(-1, 1),
                'w0': w0.astype(jnp.bfloat16),
                's1': s1.reshape(-1, 1), 't1': t1.reshape(-1, 1),
                'w1': w1.astype(jnp.bfloat16),
                'b1': b1.reshape(-1, 1),
            })
        num_feat += num_layers * growth_rate
        trans = None
        if i != len(block_config) - 1:
            s, t = bn_fold(num_feat)
            wt = kaiming_conv(next(keys), num_feat // 2, num_feat, 1, 1)[:, :, 0, 0]
            trans = {'s': s.reshape(-1, 1), 't': t.reshape(-1, 1),
                     'w': wt.astype(jnp.bfloat16)}
            num_feat //= 2
        blocks.append((layers, trans))
    params['blocks'] = blocks

    s, t = bn_fold(num_feat)
    params['last_s'], params['last_t'] = s.reshape(-1, 1), t.reshape(-1, 1)
    params['cls_w'] = (jax.random.normal(next(keys), (num_classes, num_feat), jnp.float32)
                       / (num_feat ** 0.5)).astype(jnp.bfloat16)                  # (nc, C)
    params['cls_b'] = jnp.zeros((num_classes, 1), jnp.float32)
    return params


# ---------------- forward pass ----------------

def dense_net_forward(params, x_nchw):
    n, cin_img, h, w = x_nchw.shape

    # first_conv (7x7, stride 2, pad 3, no bias) via bf16 im2col + fused matmul/BN/ReLU.
    ho = (h + 2 * 3 - 7) // 2 + 1
    wo = (w + 2 * 3 - 7) // 2 + 1
    xp = jnp.pad(x_nchw.astype(jnp.bfloat16), ((0, 0), (0, 0), (3, 3), (3, 3)))
    taps = []
    for c in range(cin_img):            # K ordered (cin, kh, kw): matches stem_w, no transpose
        for dh in range(7):
            for dw in range(7):
                taps.append(xp[:, c, dh:dh + 2 * (ho - 1) + 1:2, dw:dw + 2 * (wo - 1) + 1:2])
    k = cin_img * 49
    p = n * ho * wo
    k_pad = params['stem_w'].shape[1]
    cout = params['stem_w'].shape[0]
    tp = _pixel_tile(p, 4 * k_pad + 16 * cout)
    p_pad = _round_up(p, tp)
    pat = jnp.stack(taps, axis=0).reshape(k, p)
    pat = jnp.pad(pat, ((0, k_pad - k), (0, p_pad - p)))
    y = stem_conv_bn_relu(pat, params['stem_w'], params['stem_s'], params['stem_t'], tp)
    y = y[:, :p].reshape(cout, n, ho, wo)

    # first_pool: MaxPool2d(kernel=3, stride=2, padding=1) -- XLA wrapper glue.
    feat = lax.reduce_window(y, jnp.array(-jnp.inf, y.dtype), lax.max,
                             (1, 1, 3, 3), (1, 1, 2, 2),
                             ((0, 0), (0, 0), (1, 1), (1, 1)))

    # dense blocks: block-fused Pallas kernels on channel-major bf16 slabs.
    for layers, trans in params['blocks']:
        c0, nb, hh, ww = feat.shape
        g = layers[0]['w1'].shape[0]
        c_final = c0 + len(layers) * g
        p = nb * hh * ww
        tp = _pixel_tile(p, 12 * c_final)
        p_pad = _round_up(p, tp)
        slab = jnp.pad(feat.reshape(c0, p), ((0, 0), (0, p_pad - p)))
        slab = dense_block(slab, layers, c0, g, tp)
        # drop_rate == 0 -> F.dropout is a no-op
        if trans is not None:
            t2 = transition_conv(slab, trans, c_final, tp)
            ct = t2.shape[0]
            t2 = t2[:, :p].reshape(ct, nb, hh, ww)
            # 1x1 conv with padding=1, no bias -> zero border, then AvgPool2d(2, 2).
            t2 = jnp.pad(t2, ((0, 0), (0, 0), (1, 1), (1, 1)))
            hp, wp = hh + 2, ww + 2
            hp2, wp2 = hp - hp % 2, wp - wp % 2
            t2 = t2[:, :, :hp2, :wp2].reshape(ct, nb, hp2 // 2, 2, wp2 // 2, 2)
            feat = t2.astype(jnp.float32).mean(axis=(3, 5)).astype(jnp.bfloat16)
        else:
            feat = slab[:, :p].reshape(c_final, nb, hh, ww)

    # last_norm + relu + adaptive_avg_pool2d((1,1)) + flatten + classifier (tiled fused head).
    c, nb, hh, ww = feat.shape
    hw = hh * ww
    p = nb * hw
    tp = _pixel_tile(p, 8 * c)
    p_pad = _round_up(p, tp)
    x2d = jnp.pad(feat.reshape(c, p), ((0, 0), (0, p_pad - p)))
    pool = jnp.repeat(jnp.eye(nb, dtype=jnp.bfloat16), hw, axis=0)   # 0/1 membership (exact in bf16)
    pool = jnp.pad(pool, ((0, p_pad - p), (0, 0)))
    return head(x2d, params['last_s'], params['last_t'], pool,
                params['cls_w'], params['cls_b'], tp, 1.0 / float(hw))


if __name__ == "__main__":
    # small-config DenseNet consistent with the module's constructor knobs
    growth_rate = 8
    block_config = (2, 2)
    init_features = 16
    bn_size = 2
    num_classes = 10

    key = jax.random.PRNGKey(0)
    pkey, xkey = jax.random.split(key)
    params = init_params(pkey, growth_rate, block_config, init_features, bn_size, num_classes)
    x = jax.random.normal(xkey, (2, 3, 32, 32), jnp.float32)  # NCHW like PyTorch

    fwd = jax.jit(dense_net_forward)
    out = fwd(params, x)
    jax.block_until_ready(out)
    assert out.shape == (2, num_classes)
    assert bool(jnp.all(jnp.isfinite(out)))
    print("KERNEL_OK")
</pallas_src>

<mosaic_0001>
module attributes {stable_mosaic.version = 11 : i64} {
  func.func @_stem_kernel(%arg0: i32, %arg1: memref<16x256xbf16, #tpu.memory_space<vmem>>, %arg2: memref<256x128xbf16, #tpu.memory_space<vmem>>, %arg3: memref<16x1xf32, #tpu.memory_space<vmem>>, %arg4: memref<16x1xf32, #tpu.memory_space<vmem>>, %arg5: memref<16x128xbf16, #tpu.memory_space<vmem>>) attributes {dimension_semantics = [#tpu.dimension_semantics<parallel>], iteration_bounds = array<i64: 4>, scalar_prefetch = 0 : i64, scratch_operands = 0 : i64, tpu.core_type = #tpu.core_type<tc>, window_params = [{pipeline_mode = #tpu.pipeline_mode<synchronous>, transform_indices = @transform_0, window_bounds = array<i64: 16, 256>}, {transform_indices = @transform_1, window_bounds = array<i64: 256, 128>}, {pipeline_mode = #tpu.pipeline_mode<synchronous>, transform_indices = @transform_2, window_bounds = array<i64: 16, 1>}, {pipeline_mode = #tpu.pipeline_mode<synchronous>, transform_indices = @transform_3, window_bounds = array<i64: 16, 1>}, {transform_indices = @transform_4, window_bounds = array<i64: 16, 128>}]} {
    %c0 = arith.constant 0 : index
    %c0_0 = arith.constant 0 : index
    %0 = vector.load %arg1[%c0, %c0_0] : memref<16x256xbf16, #tpu.memory_space<vmem>>, vector<16x256xbf16>
    %c0_1 = arith.constant 0 : index
    %c0_2 = arith.constant 0 : index
    %1 = vector.load %arg2[%c0_1, %c0_2] : memref<256x128xbf16, #tpu.memory_space<vmem>>, vector<256x128xbf16>
    %cst = arith.constant dense<0.000000e+00> : vector<16x128xf32>
    %2 = tpu.matmul %0, %1, %cst {dimension_numbers = #tpu.dot_dimension_numbers<[1], [0], [0], [1], [0, 0, 1, 1], [], []>} : vector<16x256xbf16>, vector<256x128xbf16>, vector<16x128xf32> -> vector<16x128xf32>
    %c0_3 = arith.constant 0 : index
    %c0_4 = arith.constant 0 : index
    %3 = vector.load %arg3[%c0_3, %c0_4] : memref<16x1xf32, #tpu.memory_space<vmem>>, vector<16x1xf32>
    %4 = vector.broadcast %3 : vector<16x1xf32> to vector<16x128xf32>
    %5 = arith.mulf %2, %4 : vector<16x128xf32>
    %c0_5 = arith.constant 0 : index
    %c0_6 = arith.constant 0 : index
    %6 = vector.load %arg4[%c0_5, %c0_6] : memref<16x1xf32, #tpu.memory_space<vmem>>, vector<16x1xf32>
    %7 = vector.broadcast %6 : vector<16x1xf32> to vector<16x128xf32>
    %8 = arith.addf %5, %7 : vector<16x128xf32>
    %cst_7 = arith.constant 0.000000e+00 : f32
    %9 = vector.broadcast %cst_7 : f32 to vector<16x128xf32>
    %10 = arith.maximumf %8, %9 : vector<16x128xf32>
    %11 = arith.truncf %10 : vector<16x128xf32> to vector<16x128xbf16>
    %c0_8 = arith.constant 0 : index
    %c0_9 = arith.constant 0 : index
    %12 = vector.load %arg5[%c0_8, %c0_9] : memref<16x128xbf16, #tpu.memory_space<vmem>>, vector<16x128xbf16>
    tpu.vector_store %arg5[%c0_8, %c0_9], %11 {strides = array<i32>} : memref<16x128xbf16, #tpu.memory_space<vmem>>, vector<16x128xbf16>,
    return
  }
  func.func @transform_0(%arg0: i32) -> (i32, i32) {
    %c0_i32 = arith.constant 0 : i32
    %c0_i32_0 = arith.constant 0 : i32
    %c0_i32_1 = arith.constant 0 : i32
    return %c0_i32, %c0_i32_0 : i32, i32
  }
  func.func @transform_1(%arg0: i32) -> (i32, i32) {
    %c0_i32 = arith.constant 0 : i32
    %c0_i32_0 = arith.constant 0 : i32
    return %c0_i32, %arg0 : i32, i32
  }
  func.func @transform_2(%arg0: i32) -> (i32, i32) {
    %c0_i32 = arith.constant 0 : i32
    %c0_i32_0 = arith.constant 0 : i32
    %c0_i32_1 = arith.constant 0 : i32
    return %c0_i32, %c0_i32_0 : i32, i32
  }
  func.func @transform_3(%arg0: i32) -> (i32, i32) {
    %c0_i32 = arith.constant 0 : i32
    %c0_i32_0 = arith.constant 0 : i32
    %c0_i32_1 = arith.constant 0 : i32
    return %c0_i32, %c0_i32_0 : i32, i32
  }
  func.func @transform_4(%arg0: i32) -> (i32, i32) {
    %c0_i32 = arith.constant 0 : i32
    %c0_i32_0 = arith.constant 0 : i32
    return %c0_i32, %arg0 : i32, i32
  }
}

module attributes {stable_mosaic.version = 11 : i64} {
  func.func @kernel(%arg0: i32, %arg1: memref<16x128xbf16, #tpu.memory_space<vmem>>, %arg2: memref<16x1xf32, #tpu.memory_space<vmem>>, %arg3: memref<16x1xf32, #tpu.memory_space<vmem>>, %arg4: memref<16x16xbf16, #tpu.memory_space<vmem>>, %arg5: memref<16x1xf32, #tpu.memory_space<vmem>>, %arg6: memref<16x1xf32, #tpu.memory_space<vmem>>, %arg7: memref<8x16xbf16, #tpu.memory_space<vmem>>, %arg8: memref<8x1xf32, #tpu.memory_space<vmem>>, %arg9: memref<24x1xf32, #tpu.memory_space<vmem>>, %arg10: memref<24x1xf32, #tpu.memory_space<vmem>>, %arg11: memref<16x24xbf16, #tpu.memory_space<vmem>>, %arg12: memref<16x1xf32, #tpu.memory_space<vmem>>, %arg13: memref<16x1xf32, #tpu.memory_space<vmem>>, %arg14: memref<8x16xbf16, #tpu.memory_space<vmem>>, %arg15: memref<8x1xf32, #tpu.memory_space<vmem>>, %arg16: memref<32x128xbf16, #tpu.memory_space<vmem>>, %arg17: memref<32x128xf32, #tpu.memory_space<vmem>>) attributes {dimension_semantics = [#tpu.dimension_semantics<parallel>], iteration_bounds = array<i64: 1>, scalar_prefetch = 0 : i64, scratch_operands = 1 : i64, tpu.core_type = #tpu.core_type<tc>, window_params = [{transform_indices = @transform_0, window_bounds = array<i64: 16, 128>}, {pipeline_mode = #tpu.pipeline_mode<synchronous>, transform_indices = @transform_1, window_bounds = array<i64: 16, 1>}, {pipeline_mode = #tpu.pipeline_mode<synchronous>, transform_indices = @transform_2, window_bounds = array<i64: 16, 1>}, {pipeline_mode = #tpu.pipeline_mode<synchronous>, transform_indices = @transform_3, window_bounds = array<i64: 16, 16>}, {pipeline_mode = #tpu.pipeline_mode<synchronous>, transform_indices = @transform_4, window_bounds = array<i64: 16, 1>}, {pipeline_mode = #tpu.pipeline_mode<synchronous>, transform_indices = @transform_5, window_bounds = array<i64: 16, 1>}, {pipeline_mode = #tpu.pipeline_mode<synchronous>, transform_indices = @transform_6, window_bounds = array<i64: 8, 16>}, {pipeline_mode = #tpu.pipeline_mode<synchronous>, transform_indices = @transform_7, window_bounds = array<i64: 8, 1>}, {pipeline_mode = #tpu.pipeline_mode<synchronous>, transform_indices = @transform_8, window_bounds = array<i64: 24, 1>}, {pipeline_mode = #tpu.pipeline_mode<synchronous>, transform_indices = @transform_9, window_bounds = array<i64: 24, 1>}, {pipeline_mode = #tpu.pipeline_mode<synchronous>, transform_indices = @transform_10, window_bounds = array<i64: 16, 24>}, {pipeline_mode = #tpu.pipeline_mode<synchronous>, transform_indices = @transform_11, window_bounds = array<i64: 16, 1>}, {pipeline_mode = #tpu.pipeline_mode<synchronous>, transform_indices = @transform_12, window_bounds = array<i64: 16, 1>}, {pipeline_mode = #tpu.pipeline_mode<synchronous>, transform_indices = @transform_13, window_bounds = array<i64: 8, 16>}, {pipeline_mode = #tpu.pipeline_mode<synchronous>, transform_indices = @transform_14, window_bounds = array<i64: 8, 1>}, {transform_indices = @transform_15, window_bounds = array<i64: 32, 128>}]} {
    %c0 = arith.constant 0 : index
    %c0_0 = arith.constant 0 : index
    %0 = vector.load %arg1[%c0, %c0_0] : memref<16x128xbf16, #tpu.memory_space<vmem>>, vector<16x128xbf16>
    %1 = arith.extf %0 : vector<16x128xbf16> to vector<16x128xf32>
    %c0_1 = arith.constant 0 : index
    %c0_2 = arith.constant 0 : index
    %2 = vector.load %arg17[%c0_1, %c0_2] : memref<32x128xf32, #tpu.memory_space<vmem>>, vector<16x128xf32>
    tpu.vector_store %arg17[%c0_1, %c0_2], %1 {strides = array<i32>} : memref<32x128xf32, #tpu.memory_space<vmem>>, vector<16x128xf32>,
    %c0_3 = arith.constant 0 : index
    %c0_4 = arith.constant 0 : index
    %3 = vector.load %arg17[%c0_3, %c0_4] : memref<32x128xf32, #tpu.memory_space<vmem>>, vector<16x128xf32>
    %c0_5 = arith.constant 0 : index
    %c0_6 = arith.constant 0 : index
    %4 = vector.load %arg2[%c0_5, %c0_6] : memref<16x1xf32, #tpu.memory_space<vmem>>, vector<16x1xf32>
    %5 = vector.broadcast %4 : vector<16x1xf32> to vector<16x128xf32>
    %6 = arith.mulf %3, %5 : vector<16x128xf32>
    %c0_7 = arith.constant 0 : index
    %c0_8 = arith.constant 0 : index
    %7 = vector.load %arg3[%c0_7, %c0_8] : memref<16x1xf32, #tpu.memory_space<vmem>>, vector<16x1xf32>
    %8 = vector.broadcast %7 : vector<16x1xf32> to vector<16x128xf32>
    %9 = arith.addf %6, %8 : vector<16x128xf32>
    %cst = arith.constant 0.000000e+00 : f32
    %10 = vector.broadcast %cst : f32 to vector<16x128xf32>
    %11 = arith.maximumf %9, %10 : vector<16x128xf32>
    %c0_9 = arith.constant 0 : index
    %c0_10 = arith.constant 0 : index
    %12 = vector.load %arg4[%c0_9, %c0_10] : memref<16x16xbf16, #tpu.memory_space<vmem>>, vector<16x16xbf16>
    %13 = arith.truncf %11 : vector<16x128xf32> to vector<16x128xbf16>
    %cst_11 = arith.constant dense<0.000000e+00> : vector<16x128xf32>
    %14 = tpu.matmul %12, %13, %cst_11 {dimension_numbers = #tpu.dot_dimension_numbers<[1], [0], [0], [1], [0, 0, 1, 1], [], []>} : vector<16x16xbf16>, vector<16x128xbf16>, vector<16x128xf32> -> vector<16x128xf32>
    %c0_12 = arith.constant 0 : index
    %c0_13 = arith.constant 0 : index
    %15 = vector.load %arg5[%c0_12, %c0_13] : memref<16x1xf32, #tpu.memory_space<vmem>>, vector<16x1xf32>
    %16 = vector.broadcast %15 : vector<16x1xf32> to vector<16x128xf32>
    %17 = arith.mulf %14, %16 : vector<16x128xf32>
    %c0_14 = arith.constant 0 : index
    %c0_15 = arith.constant 0 : index
    %18 = vector.load %arg6[%c0_14, %c0_15] : memref<16x1xf32, #tpu.memory_space<vmem>>, vector<16x1xf32>
    %19 = vector.broadcast %18 : vector<16x1xf32> to vector<16x128xf32>
    %20 = arith.addf %17, %19 : vector<16x128xf32>
    %cst_16 = arith.constant 0.000000e+00 : f32
    %21 = vector.broadcast %cst_16 : f32 to vector<16x128xf32>
    %22 = arith.maximumf %20, %21 : vector<16x128xf32>
    %c0_17 = arith.constant 0 : index
    %c0_18 = arith.constant 0 : index
    %23 = vector.load %arg7[%c0_17, %c0_18] : memref<8x16xbf16, #tpu.memory_space<vmem>>, vector<8x16xbf16>
    %24 = arith.truncf %22 : vector<16x128xf32> to vector<16x128xbf16>
    %cst_19 = arith.constant dense<0.000000e+00> : vector<8x128xf32>
    %25 = tpu.matmul %23, %24, %cst_19 {dimension_numbers = #tpu.dot_dimension_numbers<[1], [0], [0], [1], [0, 0, 1, 1], [], []>} : vector<8x16xbf16>, vector<16x128xbf16>, vector<8x128xf32> -> vector<8x128xf32>
    %c0_20 = arith.constant 0 : index
    %c0_21 = arith.constant 0 : index
    %26 = vector.load %arg8[%c0_20, %c0_21] : memref<8x1xf32, #tpu.memory_space<vmem>>, vector<8x1xf32>
    %27 = vector.broadcast %26 : vector<8x1xf32> to vector<8x128xf32>
    %28 = arith.addf %25, %27 : vector<8x128xf32>
    %c16 = arith.constant 16 : index
    %c0_22 = arith.constant 0 : index
    %29 = vector.load %arg17[%c16, %c0_22] : memref<32x128xf32, #tpu.memory_space<vmem>>, vector<8x128xf32>
    tpu.vector_store %arg17[%c16, %c0_22], %28 {strides = array<i32>} : memref<32x128xf32, #tpu.memory_space<vmem>>, vector<8x128xf32>,
    %c0_23 = arith.constant 0 : index
    %c0_24 = arith.constant 0 : index
    %30 = vector.load %arg17[%c0_23, %c0_24] : memref<32x128xf32, #tpu.memory_space<vmem>>, vector<24x128xf32>
    %c0_25 = arith.constant 0 : index
    %c0_26 = arith.constant 0 : index
    %31 = vector.load %arg9[%c0_25, %c0_26] : memref<24x1xf32, #tpu.memory_space<vmem>>, vector<24x1xf32>
    %32 = vector.broadcast %31 : vector<24x1xf32> to vector<24x128xf32>
    %33 = arith.mulf %30, %32 : vector<24x128xf32>
    %c0_27 = arith.constant 0 : index
    %c0_28 = arith.constant 0 : index
    %34 = vector.load %arg10[%c0_27, %c0_28] : memref<24x1xf32, #tpu.memory_space<vmem>>, vector<24x1xf32>
    %35 = vector.broadcast %34 : vector<24x1xf32> to vector<24x128xf32>
    %36 = arith.addf %33, %35 : vector<24x128xf32>
    %cst_29 = arith.constant 0.000000e+00 : f32
    %37 = vector.broadcast %cst_29 : f32 to vector<24x128xf32>
    %38 = arith.maximumf %36, %37 : vector<24x128xf32>
    %c0_30 = arith.constant 0 : index
    %c0_31 = arith.constant 0 : index
    %39 = vector.load %arg11[%c0_30, %c0_31] : memref<16x24xbf16, #tpu.memory_space<vmem>>, vector<16x24xbf16>
    %40 = arith.truncf %38 : vector<24x128xf32> to vector<24x128xbf16>
    %cst_32 = arith.constant dense<0.000000e+00> : vector<16x128xf32>
    %41 = tpu.matmul %39, %40, %cst_32 {dimension_numbers = #tpu.dot_dimension_numbers<[1], [0], [0], [1], [0, 0, 1, 1], [], []>} : vector<16x24xbf16>, vector<24x128xbf16>, vector<16x128xf32> -> vector<16x128xf32>
    %c0_33 = arith.constant 0 : index
    %c0_34 = arith.constant 0 : index
    %42 = vector.load %arg12[%c0_33, %c0_34] : memref<16x1xf32, #tpu.memory_space<vmem>>, vector<16x1xf32>
    %43 = vector.broadcast %42 : vector<16x1xf32> to vector<16x128xf32>
    %44 = arith.mulf %41, %43 : vector<16x128xf32>
    %c0_35 = arith.constant 0 : index
    %c0_36 = arith.constant 0 : index
    %45 = vector.load %arg13[%c0_35, %c0_36] : memref<16x1xf32, #tpu.memory_space<vmem>>, vector<16x1xf32>
    %46 = vector.broadcast %45 : vector<16x1xf32> to vector<16x128xf32>
    %47 = arith.addf %44, %46 : vector<16x128xf32>
    %cst_37 = arith.constant 0.000000e+00 : f32
    %48 = vector.broadcast %cst_37 : f32 to vector<16x128xf32>
    %49 = arith.maximumf %47, %48 : vector<16x128xf32>
    %c0_38 = arith.constant 0 : index
    %c0_39 = arith.constant 0 : index
    %50 = vector.load %arg14[%c0_38, %c0_39] : memref<8x16xbf16, #tpu.memory_space<vmem>>, vector<8x16xbf16>
    %51 = arith.truncf %49 : vector<16x128xf32> to vector<16x128xbf16>
    %cst_40 = arith.constant dense<0.000000e+00> : vector<8x128xf32>
    %52 = tpu.matmul %50, %51, %cst_40 {dimension_numbers = #tpu.dot_dimension_numbers<[1], [0], [0], [1], [0, 0, 1, 1], [], []>} : vector<8x16xbf16>, vector<16x128xbf16>, vector<8x128xf32> -> vector<8x128xf32>
    %c0_41 = arith.constant 0 : index
    %c0_42 = arith.constant 0 : index
    %53 = vector.load %arg15[%c0_41, %c0_42] : memref<8x1xf32, #tpu.memory_space<vmem>>, vector<8x1xf32>
    %54 = vector.broadcast %53 : vector<8x1xf32> to vector<8x128xf32>
    %55 = arith.addf %52, %54 : vector<8x128xf32>
    %c24 = arith.constant 24 : index
    %c0_43 = arith.constant 0 : index
    %56 = vector.load %arg17[%c24, %c0_43] : memref<32x128xf32, #tpu.memory_space<vmem>>, vector<8x128xf32>
    tpu.vector_store %arg17[%c24, %c0_43], %55 {strides = array<i32>} : memref<32x128xf32, #tpu.memory_space<vmem>>, vector<8x128xf32>,
    %c0_44 = arith.constant 0 : index
    %c0_45 = arith.constant 0 : index
    %57 = vector.load %arg17[%c0_44, %c0_45] : memref<32x128xf32, #tpu.memory_space<vmem>>, vector<32x128xf32>
    %58 = arith.truncf %57 : vector<32x128xf32> to vector<32x128xbf16>
    %c0_46 = arith.constant 0 : index
    %c0_47 = arith.constant 0 : index
    %59 = vector.load %arg16[%c0_46, %c0_47] : memref<32x128xbf16, #tpu.memory_space<vmem>>, vector<32x128xbf16>
    tpu.vector_store %arg16[%c0_46, %c0_47], %58 {strides = array<i32>} : memref<32x128xbf16, #tpu.memory_space<vmem>>, vector<32x128xbf16>,
    return
  }
  func.func @transform_0(%arg0: i32) -> (i32, i32) {
    %c0_i32 = arith.constant 0 : i32
    %c0_i32_0 = arith.constant 0 : i32
    return %c0_i32, %arg0 : i32, i32
  }
  func.func @transform_1(%arg0: i32) -> (i32, i32) {
    %c0_i32 = arith.constant 0 : i32
    %c0_i32_0 = arith.constant 0 : i32
    %c0_i32_1 = arith.constant 0 : i32
    return %c0_i32, %c0_i32_0 : i32, i32
  }
  func.func @transform_2(%arg0: i32) -> (i32, i32) {
    %c0_i32 = arith.constant 0 : i32
    %c0_i32_0 = arith.constant 0 : i32
    %c0_i32_1 = arith.constant 0 : i32
    return %c0_i32, %c0_i32_0 : i32, i32
  }
  func.func @transform_3(%arg0: i32) -> (i32, i32) {
    %c0_i32 = arith.constant 0 : i32
    %c0_i32_0 = arith.constant 0 : i32
    %c0_i32_1 = arith.constant 0 : i32
    return %c0_i32, %c0_i32_0 : i32, i32
  }
  func.func @transform_4(%arg0: i32) -> (i32, i32) {
    %c0_i32 = arith.constant 0 : i32
    %c0_i32_0 = arith.constant 0 : i32
    %c0_i32_1 = arith.constant 0 : i32
    return %c0_i32, %c0_i32_0 : i32, i32
  }
  func.func @transform_5(%arg0: i32) -> (i32, i32) {
    %c0_i32 = arith.constant 0 : i32
    %c0_i32_0 = arith.constant 0 : i32
    %c0_i32_1 = arith.constant 0 : i32
    return %c0_i32, %c0_i32_0 : i32, i32
  }
  func.func @transform_6(%arg0: i32) -> (i32, i32) {
    %c0_i32 = arith.constant 0 : i32
    %c0_i32_0 = arith.constant 0 : i32
    %c0_i32_1 = arith.constant 0 : i32
    return %c0_i32, %c0_i32_0 : i32, i32
  }
  func.func @transform_7(%arg0: i32) -> (i32, i32) {
    %c0_i32 = arith.constant 0 : i32
    %c0_i32_0 = arith.constant 0 : i32
    %c0_i32_1 = arith.constant 0 : i32
    return %c0_i32, %c0_i32_0 : i32, i32
  }
  func.func @transform_8(%arg0: i32) -> (i32, i32) {
    %c0_i32 = arith.constant 0 : i32
    %c0_i32_0 = arith.constant 0 : i32
    %c0_i32_1 = arith.constant 0 : i32
    return %c0_i32, %c0_i32_0 : i32, i32
  }
  func.func @transform_9(%arg0: i32) -> (i32, i32) {
    %c0_i32 = arith.constant 0 : i32
    %c0_i32_0 = arith.constant 0 : i32
    %c0_i32_1 = arith.constant 0 : i32
    return %c0_i32, %c0_i32_0 : i32, i32
  }
  func.func @transform_10(%arg0: i32) -> (i32, i32) {
    %c0_i32 = arith.constant 0 : i32
    %c0_i32_0 = arith.constant 0 : i32
    %c0_i32_1 = arith.constant 0 : i32
    return %c0_i32, %c0_i32_0 : i32, i32
  }
  func.func @transform_11(%arg0: i32) -> (i32, i32) {
    %c0_i32 = arith.constant 0 : i32
    %c0_i32_0 = arith.constant 0 : i32
    %c0_i32_1 = arith.constant 0 : i32
    return %c0_i32, %c0_i32_0 : i32, i32
  }
  func.func @transform_12(%arg0: i32) -> (i32, i32) {
    %c0_i32 = arith.constant 0 : i32
    %c0_i32_0 = arith.constant 0 : i32
    %c0_i32_1 = arith.constant 0 : i32
    return %c0_i32, %c0_i32_0 : i32, i32
  }
  func.func @transform_13(%arg0: i32) -> (i32, i32) {
    %c0_i32 = arith.constant 0 : i32
    %c0_i32_0 = arith.constant 0 : i32
    %c0_i32_1 = arith.constant 0 : i32
    return %c0_i32, %c0_i32_0 : i32, i32
  }
  func.func @transform_14(%arg0: i32) -> (i32, i32) {
    %c0_i32 = arith.constant 0 : i32
    %c0_i32_0 = arith.constant 0 : i32
    %c0_i32_1 = arith.constant 0 : i32
    return %c0_i32, %c0_i32_0 : i32, i32
  }
  func.func @transform_15(%arg0: i32) -> (i32, i32) {
    %c0_i32 = arith.constant 0 : i32
    %c0_i32_0 = arith.constant 0 : i32
    return %c0_i32, %arg0 : i32, i32
  }
}

module attributes {stable_mosaic.version = 11 : i64} {
  func.func @_transition_kernel(%arg0: i32, %arg1: memref<32x128xbf16, #tpu.memory_space<vmem>>, %arg2: memref<32x1xf32, #tpu.memory_space<vmem>>, %arg3: memref<32x1xf32, #tpu.memory_space<vmem>>, %arg4: memref<16x32xbf16, #tpu.memory_space<vmem>>, %arg5: memref<16x128xbf16, #tpu.memory_space<vmem>>) attributes {dimension_semantics = [#tpu.dimension_semantics<parallel>], iteration_bounds = array<i64: 1>, scalar_prefetch = 0 : i64, scratch_operands = 0 : i64, tpu.core_type = #tpu.core_type<tc>, window_params = [{transform_indices = @transform_0, window_bounds = array<i64: 32, 128>}, {pipeline_mode = #tpu.pipeline_mode<synchronous>, transform_indices = @transform_1, window_bounds = array<i64: 32, 1>}, {pipeline_mode = #tpu.pipeline_mode<synchronous>, transform_indices = @transform_2, window_bounds = array<i64: 32, 1>}, {pipeline_mode = #tpu.pipeline_mode<synchronous>, transform_indices = @transform_3, window_bounds = array<i64: 16, 32>}, {transform_indices = @transform_4, window_bounds = array<i64: 16, 128>}]} {
    %c0 = arith.constant 0 : index
    %c0_0 = arith.constant 0 : index
    %0 = vector.load %arg1[%c0, %c0_0] : memref<32x128xbf16, #tpu.memory_space<vmem>>, vector<32x128xbf16>
    %1 = arith.extf %0 : vector<32x128xbf16> to vector<32x128xf32>
    %c0_1 = arith.constant 0 : index
    %c0_2 = arith.constant 0 : index
    %2 = vector.load %arg2[%c0_1, %c0_2] : memref<32x1xf32, #tpu.memory_space<vmem>>, vector<32x1xf32>
    %3 = vector.broadcast %2 : vector<32x1xf32> to vector<32x128xf32>
    %4 = arith.mulf %1, %3 : vector<32x128xf32>
    %c0_3 = arith.constant 0 : index
    %c0_4 = arith.constant 0 : index
    %5 = vector.load %arg3[%c0_3, %c0_4] : memref<32x1xf32, #tpu.memory_space<vmem>>, vector<32x1xf32>
    %6 = vector.broadcast %5 : vector<32x1xf32> to vector<32x128xf32>
    %7 = arith.addf %4, %6 : vector<32x128xf32>
    %cst = arith.constant 0.000000e+00 : f32
    %8 = vector.broadcast %cst : f32 to vector<32x128xf32>
    %9 = arith.maximumf %7, %8 : vector<32x128xf32>
    %c0_5 = arith.constant 0 : index
    %c0_6 = arith.constant 0 : index
    %10 = vector.load %arg4[%c0_5, %c0_6] : memref<16x32xbf16, #tpu.memory_space<vmem>>, vector<16x32xbf16>
    %11 = arith.truncf %9 : vector<32x128xf32> to vector<32x128xbf16>
    %cst_7 = arith.constant dense<0.000000e+00> : vector<16x128xf32>
    %12 = tpu.matmul %10, %11, %cst_7 {dimension_numbers = #tpu.dot_dimension_numbers<[1], [0], [0], [1], [0, 0, 1, 1], [], []>} : vector<16x32xbf16>, vector<32x128xbf16>, vector<16x128xf32> -> vector<16x128xf32>
    %13 = arith.truncf %12 : vector<16x128xf32> to vector<16x128xbf16>
    %c0_8 = arith.constant 0 : index
    %c0_9 = arith.constant 0 : index
    %14 = vector.load %arg5[%c0_8, %c0_9] : memref<16x128xbf16, #tpu.memory_space<vmem>>, vector<16x128xbf16>
    tpu.vector_store %arg5[%c0_8, %c0_9], %13 {strides = array<i32>} : memref<16x128xbf16, #tpu.memory_space<vmem>>, vector<16x128xbf16>,
    return
  }
  func.func @transform_0(%arg0: i32) -> (i32, i32) {
    %c0_i32 = arith.constant 0 : i32
    %c0_i32_0 = arith.constant 0 : i32
    return %c0_i32, %arg0 : i32, i32
  }
  func.func @transform_1(%arg0: i32) -> (i32, i32) {
    %c0_i32 = arith.constant 0 : i32
    %c0_i32_0 = arith.constant 0 : i32
    %c0_i32_1 = arith.constant 0 : i32
    return %c0_i32, %c0_i32_0 : i32, i32
  }
  func.func @transform_2(%arg0: i32) -> (i32, i32) {
    %c0_i32 = arith.constant 0 : i32
    %c0_i32_0 = arith.constant 0 : i32
    %c0_i32_1 = arith.constant 0 : i32
    return %c0_i32, %c0_i32_0 : i32, i32
  }
  func.func @transform_3(%arg0: i32) -> (i32, i32) {
    %c0_i32 = arith.constant 0 : i32
    %c0_i32_0 = arith.constant 0 : i32
    %c0_i32_1 = arith.constant 0 : i32
    return %c0_i32, %c0_i32_0 : i32, i32
  }
  func.func @transform_4(%arg0: i32) -> (i32, i32) {
    %c0_i32 = arith.constant 0 : i32
    %c0_i32_0 = arith.constant 0 : i32
    return %c0_i32, %arg0 : i32, i32
  }
}

module attributes {stable_mosaic.version = 11 : i64} {
  func.func @kernel(%arg0: i32, %arg1: memref<32x128xbf16, #tpu.memory_space<vmem>>, %arg2: memref<32x1xf32, #tpu.memory_space<vmem>>, %arg3: memref<32x1xf32, #tpu.memory_space<vmem>>, %arg4: memref<128x2xbf16, #tpu.memory_space<vmem>>, %arg5: memref<10x32xbf16, #tpu.memory_space<vmem>>, %arg6: memref<10x1xf32, #tpu.memory_space<vmem>>, %arg7: memref<10x2xf32, #tpu.memory_space<vmem>>, %arg8: memref<32x2xf32, #tpu.memory_space<vmem>>) attributes {dimension_semantics = [#tpu.dimension_semantics<arbitrary>], iteration_bounds = array<i64: 1>, scalar_prefetch = 0 : i64, scratch_operands = 1 : i64, tpu.core_type = #tpu.core_type<tc>, window_params = [{transform_indices = @transform_0, window_bounds = array<i64: 32, 128>}, {pipeline_mode = #tpu.pipeline_mode<synchronous>, transform_indices = @transform_1, window_bounds = array<i64: 32, 1>}, {pipeline_mode = #tpu.pipeline_mode<synchronous>, transform_indices = @transform_2, window_bounds = array<i64: 32, 1>}, {transform_indices = @transform_3, window_bounds = array<i64: 128, 2>}, {pipeline_mode = #tpu.pipeline_mode<synchronous>, transform_indices = @transform_4, window_bounds = array<i64: 10, 32>}, {pipeline_mode = #tpu.pipeline_mode<synchronous>, transform_indices = @transform_5, window_bounds = array<i64: 10, 1>}, {pipeline_mode = #tpu.pipeline_mode<synchronous>, transform_indices = @transform_6, window_bounds = array<i64: 10, 2>}]} {
    %c0_i32 = arith.constant 0 : i32
    %0 = arith.cmpi eq, %arg0, %c0_i32 : i32
    %1 = arith.extui %0 : i1 to i32
    %c0_i32_0 = arith.constant 0 : i32
    %2 = arith.cmpi ne, %1, %c0_i32_0 : i32
    scf.if %2 {
      %cst_15 = arith.constant 0.000000e+00 : f32
      %22 = vector.broadcast %cst_15 : f32 to vector<32x2xf32>
      %c0_16 = arith.constant 0 : index
      %c0_17 = arith.constant 0 : index
      %23 = vector.load %arg8[%c0_16, %c0_17] : memref<32x2xf32, #tpu.memory_space<vmem>>, vector<32x2xf32>
      tpu.vector_store %arg8[%c0_16, %c0_17], %22 {strides = array<i32>} : memref<32x2xf32, #tpu.memory_space<vmem>>, vector<32x2xf32>,
    } else {
    }
    %c0 = arith.constant 0 : index
    %c0_1 = arith.constant 0 : index
    %3 = vector.load %arg1[%c0, %c0_1] : memref<32x128xbf16, #tpu.memory_space<vmem>>, vector<32x128xbf16>
    %4 = arith.extf %3 : vector<32x128xbf16> to vector<32x128xf32>
    %c0_2 = arith.constant 0 : index
    %c0_3 = arith.constant 0 : index
    %5 = vector.load %arg2[%c0_2, %c0_3] : memref<32x1xf32, #tpu.memory_space<vmem>>, vector<32x1xf32>
    %6 = vector.broadcast %5 : vector<32x1xf32> to vector<32x128xf32>
    %7 = arith.mulf %4, %6 : vector<32x128xf32>
    %c0_4 = arith.constant 0 : index
    %c0_5 = arith.constant 0 : index
    %8 = vector.load %arg3[%c0_4, %c0_5] : memref<32x1xf32, #tpu.memory_space<vmem>>, vector<32x1xf32>
    %9 = vector.broadcast %8 : vector<32x1xf32> to vector<32x128xf32>
    %10 = arith.addf %7, %9 : vector<32x128xf32>
    %cst = arith.constant 0.000000e+00 : f32
    %11 = vector.broadcast %cst : f32 to vector<32x128xf32>
    %12 = arith.maximumf %10, %11 : vector<32x128xf32>
    %c0_6 = arith.constant 0 : index
    %c0_7 = arith.constant 0 : index
    %13 = vector.load %arg8[%c0_6, %c0_7] : memref<32x2xf32, #tpu.memory_space<vmem>>, vector<32x2xf32>
    %14 = arith.truncf %12 : vector<32x128xf32> to vector<32x128xbf16>
    %c0_8 = arith.constant 0 : index
    %c0_9 = arith.constant 0 : index
    %15 = vector.load %arg4[%c0_8, %c0_9] : memref<128x2xbf16, #tpu.memory_space<vmem>>, vector<128x2xbf16>
    %cst_10 = arith.constant dense<0.000000e+00> : vector<32x2xf32>
    %16 = tpu.matmul %14, %15, %cst_10 {dimension_numbers = #tpu.dot_dimension_numbers<[1], [0], [0], [1], [0, 0, 1, 1], [], []>} : vector<32x128xbf16>, vector<128x2xbf16>, vector<32x2xf32> -> vector<32x2xf32>
    %17 = arith.addf %13, %16 : vector<32x2xf32>
    %c0_11 = arith.constant 0 : index
    %c0_12 = arith.constant 0 : index
    %18 = vector.load %arg8[%c0_11, %c0_12] : memref<32x2xf32, #tpu.memory_space<vmem>>, vector<32x2xf32>
    tpu.vector_store %arg8[%c0_11, %c0_12], %17 {strides = array<i32>} : memref<32x2xf32, #tpu.memory_space<vmem>>, vector<32x2xf32>,
    %c0_i32_13 = arith.constant 0 : i32
    %19 = arith.cmpi eq, %arg0, %c0_i32_13 : i32
    %20 = arith.extui %19 : i1 to i32
    %c0_i32_14 = arith.constant 0 : i32
    %21 = arith.cmpi ne, %20, %c0_i32_14 : i32
    scf.if %21 {
      %c0_15 = arith.constant 0 : index
      %c0_16 = arith.constant 0 : index
      %22 = vector.load %arg8[%c0_15, %c0_16] : memref<32x2xf32, #tpu.memory_space<vmem>>, vector<32x2xf32>
      %cst_17 = arith.constant 4.000000e-02 : f32
      %23 = vector.broadcast %cst_17 : f32 to vector<32x2xf32>
      %24 = arith.mulf %22, %23 : vector<32x2xf32>
      %c0_18 = arith.constant 0 : index
      %c0_19 = arith.constant 0 : index
      %25 = vector.load %arg5[%c0_18, %c0_19] : memref<10x32xbf16, #tpu.memory_space<vmem>>, vector<10x32xbf16>
      %26 = arith.truncf %24 : vector<32x2xf32> to vector<32x2xbf16>
      %cst_20 = arith.constant dense<0.000000e+00> : vector<10x2xf32>
      %27 = tpu.matmul %25, %26, %cst_20 {dimension_numbers = #tpu.dot_dimension_numbers<[1], [0], [0], [1], [0, 0, 1, 1], [], []>} : vector<10x32xbf16>, vector<32x2xbf16>, vector<10x2xf32> -> vector<10x2xf32>
      %c0_21 = arith.constant 0 : index
      %c0_22 = arith.constant 0 : index
      %28 = vector.load %arg6[%c0_21, %c0_22] : memref<10x1xf32, #tpu.memory_space<vmem>>, vector<10x1xf32>
      %29 = vector.broadcast %28 : vector<10x1xf32> to vector<10x2xf32>
      %30 = arith.addf %27, %29 : vector<10x2xf32>
      %c0_23 = arith.constant 0 : index
      %c0_24 = arith.constant 0 : index
      %31 = vector.load %arg7[%c0_23, %c0_24] : memref<10x2xf32, #tpu.memory_space<vmem>>, vector<10x2xf32>
      tpu.vector_store %arg7[%c0_23, %c0_24], %30 {strides = array<i32>} : memref<10x2xf32, #tpu.memory_space<vmem>>, vector<10x2xf32>,
    } else {
    }
    return
  }
  func.func @transform_0(%arg0: i32) -> (i32, i32) {
    %c0_i32 = arith.constant 0 : i32
    %c0_i32_0 = arith.constant 0 : i32
    return %c0_i32, %arg0 : i32, i32
  }
  func.func @transform_1(%arg0: i32) -> (i32, i32) {
    %c0_i32 = arith.constant 0 : i32
    %c0_i32_0 = arith.constant 0 : i32
    %c0_i32_1 = arith.constant 0 : i32
    return %c0_i32, %c0_i32_0 : i32, i32
  }
  func.func @transform_2(%arg0: i32) -> (i32, i32) {
    %c0_i32 = arith.constant 0 : i32
    %c0_i32_0 = arith.constant 0 : i32
    %c0_i32_1 = arith.constant 0 : i32
    return %c0_i32, %c0_i32_0 : i32, i32
  }
  func.func @transform_3(%arg0: i32) -> (i32, i32) {
    %c0_i32 = arith.constant 0 : i32
    %c0_i32_0 = arith.constant 0 : i32
    return %arg0, %c0_i32 : i32, i32
  }
  func.func @transform_4(%arg0: i32) -> (i32, i32) {
    %c0_i32 = arith.constant 0 : i32
    %c0_i32_0 = arith.constant 0 : i32
    %c0_i32_1 = arith.constant 0 : i32
    return %c0_i32, %c0_i32_0 : i32, i32
  }
  func.func @transform_5(%arg0: i32) -> (i32, i32) {
    %c0_i32 = arith.constant 0 : i32
    %c0_i32_0 = arith.constant 0 : i32
    %c0_i32_1 = arith.constant 0 : i32
    return %c0_i32, %c0_i32_0 : i32, i32
  }
  func.func @transform_6(%arg0: i32) -> (i32, i32) {
    %c0_i32 = arith.constant 0 : i32
    %c0_i32_0 = arith.constant 0 : i32
    %c0_i32_1 = arith.constant 0 : i32
    return %c0_i32, %c0_i32_0 : i32, i32
  }
}

</mosaic_0001>

<llo_original>
// kernel: dense_net_forward.5
$region0: #{dense_net_forward.5}
  #allocation0 [shape = 'u32[]', space=smem, size = 0x4, offset = 0x4, fixed_abs, tag = 'smem constant byte address 0x4 - core index']
  #allocation1 [shape = 'u32[72,128]{1,0:T(1,128)}', space=vmem, size = 0x9000, scoped, tag = 'internal scratch']
  %s0 = inlined_call_operand.vmem [shape: bf16[16,256], index: 0, kind: input, shape index: {}]
  %s1 = inlined_call_operand.vmem [shape: bf16[256,512], index: 1, kind: input, shape index: {}]
  %s2 = inlined_call_operand.vmem [shape: f32[16,1], index: 2, kind: input, shape index: {}]
  %s3 = inlined_call_operand.vmem [shape: f32[16,1], index: 3, kind: input, shape index: {}]
  %s4 = inlined_call_operand.vmem [shape: bf16[16,512], index: 4, kind: output, shape index: {}]
  %s5 = sld [smem:[#allocation0]]
  $region127: #{dense_net_forward.5} parent=0
    _
  %s7 = ssub.s32 1, %s5
  %s8 = scalar_select 0, %s7, %s5
  $region1: #{dense_net_forward.5} parent=0
    #allocation2 [shape = 'u8[131072]{0}', space=vmem, size = 0x20000, scoped, tag = 'input window, operand 1']
    #allocation3 [shape = 'u8[8192]{0}', space=vmem, size = 0x2000, scoped, tag = 'output window, operand 0']
    loop: start=0, step=1, limit=6
    $region2: #{dense_net_forward.5} parent=1 // loop_pre_header
      _
    $region3: #{dense_net_forward.5} parent=1 // loop_header
      %s10 = sphi 0, %s14
      %p11 = scmp.ge.s32.totalorder %s10, 6
      %s18 = sphi 0, %s18
      %s20 = sphi 0, %s18
      %s21 = sphi 0, %s20
      %s35 = sphi 0, %s21
      %s41 = sphi 0, %s43
      %s44 = sphi 0, %s41
      %s45 = sphi 0, %s44
      %s61 = sphi 0, %s45
      %s65 = sphi 0, %s65
      %s67 = sphi 0, %s65
      %s68 = sphi 0, %s67
      %s82 = sphi 0, %s68
      %s86 = sphi 0, %s86
      %s88 = sphi 0, %s86
      %s89 = sphi 0, %s88
      %s103 = sphi 0, %s89
      %s109 = sphi 0, %s111
      %s112 = sphi 0, %s109
      %s113 = sphi 0, %s112
      %s129 = sphi 0, %s113
    $region4: #{dense_net_forward.5} parent=1 // loop_header_branch
      %13 = sbr.rel (%p11) target = $region8
    $region5: #{dense_net_forward.5} parent=1 // loop_body
      %s15 = ssub.s32 %s10, 1
      %s16 = ssub.s32 %s10, 2
      %s17 = sadd.s32 %s10, 1
      %s19 = sadd.s32 %s18, 1
      %p22 = scmp.eq.s32.totalorder %s10, 3
      %p23 = scmp.ne.s32.totalorder %s18, %s20
      %p24 = scmp.eq.s32.totalorder %s10, 0
      %p25 = por %p23, %p24
      %p26 = scmp.ne.s32.totalorder %s18, %s20
      %p27 = scmp.eq.s32.totalorder %s15, 3
      %p28 = por %p26, %p27
      %p29 = scmp.ne.s32.totalorder %s20, %s21
      %p30 = scmp.eq.s32.totalorder %s15, 0
      %p31 = por %p29, %p30
      %p32 = scmp.ne.s32.totalorder %s20, %s21
      %p33 = scmp.eq.s32.totalorder %s16, 3
      %p34 = por %p32, %p33
      %p36 = scmp.ne.s32.totalorder %s21, %s35
      %p37 = scmp.eq.s32.totalorder %s16, 0
      %p38 = por %p36, %p37
      %s39 = ssub.s32 %s10, %s17
      %p40 = scmp.eq.s32.totalorder %s39, 0
      %s42 = sadd.s32 %s41, 1
      %s43 = scalar_select %p40, %s41, %s42
      %p46 = pneg %p40
      %p47 = scmp.eq.s32.totalorder %s10, 3
      %p48 = por %p46, %p47
      %p49 = scmp.ne.s32.totalorder %s41, %s44
      %p50 = scmp.eq.s32.totalorder %s10, 0
      %p51 = por %p49, %p50
      %p52 = scmp.ne.s32.totalorder %s41, %s44
      %p53 = scmp.eq.s32.totalorder %s15, 3
      %p54 = por %p52, %p53
      %p55 = scmp.ne.s32.totalorder %s44, %s45
      %p56 = scmp.eq.s32.totalorder %s15, 0
      %p57 = por %p55, %p56
      %p58 = scmp.ne.s32.totalorder %s44, %s45
      %p59 = scmp.eq.s32.totalorder %s16, 3
      %p60 = por %p58, %p59
      %p62 = scmp.ne.s32.totalorder %s45, %s61
      %p63 = scmp.eq.s32.totalorder %s16, 0
      %p64 = por %p62, %p63
      %s66 = sadd.s32 %s65, 1
      %p69 = scmp.eq.s32.totalorder %s10, 3
      %p70 = scmp.ne.s32.totalorder %s65, %s67
      %p71 = scmp.eq.s32.totalorder %s10, 0
      %p72 = por %p70, %p71
      %p73 = scmp.ne.s32.totalorder %s65, %s67
      %p74 = scmp.eq.s32.totalorder %s15, 3
      %p75 = por %p73, %p74
      %p76 = scmp.ne.s32.totalorder %s67, %s68
      %p77 = scmp.eq.s32.totalorder %s15, 0
      %p78 = por %p76, %p77
      %p79 = scmp.ne.s32.totalorder %s67, %s68
      %p80 = scmp.eq.s32.totalorder %s16, 3
      %p81 = por %p79, %p80
      %p83 = scmp.ne.s32.totalorder %s68, %s82
      %p84 = scmp.eq.s32.totalorder %s16, 0
      %p85 = por %p83, %p84
      %s87 = sadd.s32 %s86, 1
      %p90 = scmp.eq.s32.totalorder %s10, 3
      %p91 = scmp.ne.s32.totalorder %s86, %s88
      %p92 = scmp.eq.s32.totalorder %s10, 0
      %p93 = por %p91, %p92
      %p94 = scmp.ne.s32.totalorder %s86, %s88
      %p95 = scmp.eq.s32.totalorder %s15, 3
      %p96 = por %p94, %p95
      %p97 = scmp.ne.s32.totalorder %s88, %s89
      %p98 = scmp.eq.s32.totalorder %s15, 0
      %p99 = por %p97, %p98
      %p100 = scmp.ne.s32.totalorder %s88, %s89
      %p101 = scmp.eq.s32.totalorder %s16, 3
      %p102 = por %p100, %p101
      %p104 = scmp.ne.s32.totalorder %s89, %s103
      %p105 = scmp.eq.s32.totalorder %s16, 0
      %p106 = por %p104, %p105
      %s107 = ssub.s32 %s10, %s17
      %p108 = scmp.eq.s32.totalorder %s107, 0
      %s110 = sadd.s32 %s109, 1
      %s111 = scalar_select %p108, %s109, %s110
      %p114 = pneg %p108
      %p115 = scmp.eq.s32.totalorder %s10, 3
      %p116 = por %p114, %p115
      %p117 = scmp.ne.s32.totalorder %s109, %s112
      %p118 = scmp.eq.s32.totalorder %s10, 0
      %p119 = por %p117, %p118
      %p120 = scmp.ne.s32.totalorder %s109, %s112
      %p121 = scmp.eq.s32.totalorder %s15, 3
      %p122 = por %p120, %p121
      %p123 = scmp.ne.s32.totalorder %s112, %s113
      %p124 = scmp.eq.s32.totalorder %s15, 0
      %p125 = por %p123, %p124
      %p126 = scmp.ne.s32.totalorder %s112, %s113
      %p127 = scmp.eq.s32.totalorder %s16, 3
      %p128 = por %p126, %p127
      %p130 = scmp.ne.s32.totalorder %s113, %s129
      %p131 = scmp.eq.s32.totalorder %s16, 0
      %p132 = por %p130, %p131
      %p133 = scmp.le.s32.totalorder 1, %s10
      %p134 = scmp.lt.s32.totalorder %s10, 5
      %p135 = pnand %p133, %p134
      %p136 = pneg %p135
      // Predicated region
      $region9: #{dense_net_forward.5} parent=5 // pred_check
        _
      $region10: #{dense_net_forward.5} parent=5 // pred_check_branch
        %138 = sbr.rel (%p135) target = $region12
      $region11: #{dense_net_forward.5} parent=5 // pred_region
        %s139 = ssub.s32 %s10, 1
        // Predicated region
        $region13: #{dense_net_forward.5} parent=11 // pred_check
          %p140 = pneg %p31
        $region14: #{dense_net_forward.5} parent=11 // pred_check_branch
          %142 = sbr.rel (%p140) target = $region16
        $region15: #{dense_net_forward.5} parent=11 // pred_region
          _
        $region16: #{dense_net_forward.5} parent=11 // pred_fallthru
          _
        // Predicated region
        $region17: #{dense_net_forward.5} parent=11 // pred_check
          %p143 = pneg %p78
        $region18: #{dense_net_forward.5} parent=11 // pred_check_branch
          %145 = sbr.rel (%p143) target = $region20
        $region19: #{dense_net_forward.5} parent=11 // pred_region
          _
        $region20: #{dense_net_forward.5} parent=11 // pred_fallthru
          _
        // Predicated region
        $region21: #{dense_net_forward.5} parent=11 // pred_check
          %p146 = pneg %p99
        $region22: #{dense_net_forward.5} parent=11 // pred_check_branch
          %148 = sbr.rel (%p146) target = $region24
        $region23: #{dense_net_forward.5} parent=11 // pred_region
          _
        $region24: #{dense_net_forward.5} parent=11 // pred_fallthru
          _
      $region12: #{dense_net_forward.5} parent=5 // pred_fallthru
        _
      %p149 = scmp.lt.s32.totalorder %s10, 4
      // Predicated region
      $region25: #{dense_net_forward.5} parent=5 // pred_check
        %p150 = pneg %p149
      $region26: #{dense_net_forward.5} parent=5 // pred_check_branch
        %152 = sbr.rel (%p150) target = $region28
      $region27: #{dense_net_forward.5} parent=5 // pred_region
        // Predicated region
        $region29: #{dense_net_forward.5} parent=27 // pred_check
          %p153 = pneg %p51
        $region30: #{dense_net_forward.5} parent=27 // pred_check_branch
          %155 = sbr.rel (%p153) target = $region32
        $region31: #{dense_net_forward.5} parent=27 // pred_region
          %s156 = sand.u32 %s41, 1
          %s157 = sand.u32 %s41, 1
          %s158 = smul.addr %s157, 128
          %s159 = scalar_lea.vmem [#allocation2], %s158
          %s160 = smul.addr %s10, 4
          %s161 = scalar_lea.vmem %s1, %s160
          // Predicated region
          $region33: #{dense_net_forward.5} parent=31 // pred_check
            _
          $region34: #{dense_net_forward.5} parent=31 // pred_check_branch
            %163 = sbr.rel (0) target = $region36
          $region35: #{dense_net_forward.5} parent=31 // pred_region
            // Predicated region
            $region37: #{dense_net_forward.5} parent=35 // pred_check
              _
            $region38: #{dense_net_forward.5} parent=35 // pred_check_branch
              %165 = sbr.rel target = $region40
            $region39: #{dense_net_forward.5} parent=35 // pred_region
              // Predicated region
              $region52: #{dense_net_forward.5} parent=39 // pred_check
                _
              $region53: #{dense_net_forward.5} parent=39 // pred_check_branch
                %243 = sbr.rel (0) target = $region55
              $region54: #{dense_net_forward.5} parent=39 // pred_region
                loop: start=0, step=1, limit=1
                $region56: #{dense_net_forward.5} parent=54 // loop_pre_header
                  _
                $region57: #{dense_net_forward.5} parent=54 // loop_header
                  %s245 = sphi 0, %s249
                  %p246 = scmp.ge.s32.totalorder %s245, 1
                  %s250 = sphi %s161, %s161
                  %s251 = sphi %s159, %s159
                $region58: #{dense_net_forward.5} parent=54 // loop_header_branch
                  %248 = sbr.rel (%p246) target = $region62
                $region59: #{dense_net_forward.5} parent=54 // loop_body
                  _
                $region60: #{dense_net_forward.5} parent=54 // loop_footer
                  %s249 = sadd.s32 1, %s245
                $region61: #{dense_net_forward.5} parent=54 // loop_footer_branch
                  %244 = sbr.rel target = $region57
                $region62: #{dense_net_forward.5} parent=54 // loop_exit
                  _
                %s253 = ssub.s32 16, 1
                loop: start=0, step=1, limit=1
                $region63: #{dense_net_forward.5} parent=54 // loop_pre_header
                  _
                $region64: #{dense_net_forward.5} parent=54 // loop_header
                  %s255 = sphi 0, %s259
                  %p256 = scmp.ge.s32.totalorder %s255, 1
                  %s260 = sphi %s161, %s161
                  %s261 = sphi %s159, %s159
                $region65: #{dense_net_forward.5} parent=54 // loop_header_branch
                  %258 = sbr.rel (%p256) target = $region69
                $region66: #{dense_net_forward.5} parent=54 // loop_body
                  %v262 = vld [vmem:[%s260] sm:%s253]
                  %263 = vst [vmem:[%s261] sm:%s253] %v262
                  %v264 = vld [vmem:[%s260 + $0x10] sm:%s253]
                  %265 = vst [vmem:[%s261 + $0x4] sm:%s253] %v264
                  %v266 = vld [vmem:[%s260 + $0x20] sm:%s253]
                  %267 = vst [vmem:[%s261 + $0x8] sm:%s253] %v266
                  %v268 = vld [vmem:[%s260 + $0x30] sm:%s253]
                  %269 = vst [vmem:[%s261 + $0xc] sm:%s253] %v268
                  %v270 = vld [vmem:[%s260 + $0x40] sm:%s253]
                  %271 = vst [vmem:[%s261 + $0x10] sm:%s253] %v270
                  %v272 = vld [vmem:[%s260 + $0x50] sm:%s253]
                  %273 = vst [vmem:[%s261 + $0x14] sm:%s253] %v272
                  %v274 = vld [vmem:[%s260 + $0x60] sm:%s253]
                  %275 = vst [vmem:[%s261 + $0x18] sm:%s253] %v274
                  %v276 = vld [vmem:[%s260 + $0x70] sm:%s253]
                  %277 = vst [vmem:[%s261 + $0x1c] sm:%s253] %v276
                  %v278 = vld [vmem:[%s260 + $0x80] sm:%s253]
                  %279 = vst [vmem:[%s261 + $0x20] sm:%s253] %v278
                  %v280 = vld [vmem:[%s260 + $0x90] sm:%s253]
                  %281 = vst [vmem:[%s261 + $0x24] sm:%s253] %v280
                  %v282 = vld [vmem:[%s260 + $0xa0] sm:%s253]
                  %283 = vst [vmem:[%s261 + $0x28] sm:%s253] %v282
                  %v284 = vld [vmem:[%s260 + $0xb0] sm:%s253]
                  %285 = vst [vmem:[%s261 + $0x2c] sm:%s253] %v284
                  %v286 = vld [vmem:[%s260 + $0xc0] sm:%s253]
                  %287 = vst [vmem:[%s261 + $0x30] sm:%s253] %v286
                  %v288 = vld [vmem:[%s260 + $0xd0] sm:%s253]
                  %289 = vst [vmem:[%s261 + $0x34] sm:%s253] %v288
                  %v290 = vld [vmem:[%s260 + $0xe0] sm:%s253]
                  %291 = vst [vmem:[%s261 + $0x38] sm:%s253] %v290
                  %v292 = vld [vmem:[%s260 + $0xf0] sm:%s253]
                  %293 = vst [vmem:[%s261 + $0x3c] sm:%s253] %v292
                  %v294 = vld [vmem:[%s260 + $0x100] sm:%s253]
                  %295 = vst [vmem:[%s261 + $0x40] sm:%s253] %v294
                  %v296 = vld [vmem:[%s260 + $0x110] sm:%s253]
                  %297 = vst [vmem:[%s261 + $0x44] sm:%s253] %v296
                  %v298 = vld [vmem:[%s260 + $0x120] sm:%s253]
                  %299 = vst [vmem:[%s261 + $0x48] sm:%s253] %v298
                  %v300 = vld [vmem:[%s260 + $0x130] sm:%s253]
                  %301 = vst [vmem:[%s261 + $0x4c] sm:%s253] %v300
                  %v302 = vld [vmem:[%s260 + $0x140] sm:%s253]
                  %303 = vst [vmem:[%s261 + $0x50] sm:%s253] %v302
                  %v304 = vld [vmem:[%s260 + $0x150] sm:%s253]
                  %305 = vst [vmem:[%s261 + $0x54] sm:%s253] %v304
                  %v306 = vld [vmem:[%s260 + $0x160] sm:%s253]
                  %307 = vst [vmem:[%s261 + $0x58] sm:%s253] %v306
                  %v308 = vld [vmem:[%s260 + $0x170] sm:%s253]
                  %309 = vst [vmem:[%s261 + $0x5c] sm:%s253] %v308
                  %v310 = vld [vmem:[%s260 + $0x180] sm:%s253]
                  %311 = vst [vmem:[%s261 + $0x60] sm:%s253] %v310
                  %v312 = vld [vmem:[%s260 + $0x190] sm:%s253]
                  %313 = vst [vmem:[%s261 + $0x64] sm:%s253] %v312
                  %v314 = vld [vmem:[%s260 + $0x1a0] sm:%s253]
                  %315 = vst [vmem:[%s261 + $0x68] sm:%s253] %v314
                  %v316 = vld [vmem:[%s260 + $0x1b0] sm:%s253]
                  %317 = vst [vmem:[%s261 + $0x6c] sm:%s253] %v316
                  %v318 = vld [vmem:[%s260 + $0x1c0] sm:%s253]
                  %319 = vst [vmem:[%s261 + $0x70] sm:%s253] %v318
                  %v320 = vld [vmem:[%s260 + $0x1d0] sm:%s253]
                  %321 = vst [vmem:[%s261 + $0x74] sm:%s253] %v320
                  %v322 = vld [vmem:[%s260 + $0x1e0] sm:%s253]
                  %323 = vst [vmem:[%s261 + $0x78] sm:%s253] %v322
                  %v324 = vld [vmem:[%s260 + $0x1f0] sm:%s253]
                  %325 = vst [vmem:[%s261 + $0x7c] sm:%s253] %v324
                $region67: #{dense_net_forward.5} parent=54 // loop_footer
                  %s259 = sadd.s32 1, %s255
                $region68: #{dense_net_forward.5} parent=54 // loop_footer_branch
                  %254 = sbr.rel target = $region64
                $region69: #{dense_net_forward.5} parent=54 // loop_exit
                  _
              $region55: #{dense_net_forward.5} parent=39 // pred_fallthru
                _
            $region40: #{dense_net_forward.5} parent=35 // pred_fallthru
              _
            // Predicated region
            $region41: #{dense_net_forward.5} parent=35 // pred_check
              _
            $region42: #{dense_net_forward.5} parent=35 // pred_check_branch
              %167 = sbr.rel (0) target = $region44
            $region43: #{dense_net_forward.5} parent=35 // pred_region
              %s169 = ssub.s32 16, 1
              loop: start=0, step=1, limit=1
              $region45: #{dense_net_forward.5} parent=43 // loop_pre_header
                _
              $region46: #{dense_net_forward.5} parent=43 // loop_header
                %s171 = sphi 0, %s175
                %p172 = scmp.ge.s32.totalorder %s171, 1
                %s176 = sphi %s161, %s161
                %s177 = sphi %s159, %s159
              $region47: #{dense_net_forward.5} parent=43 // loop_header_branch
                %174 = sbr.rel (%p172) target = $region51
              $region48: #{dense_net_forward.5} parent=43 // loop_body
                %v178 = vld [vmem:[%s176] sm:%s169]
                %179 = vst [vmem:[%s177] sm:%s169] %v178
                %v180 = vld [vmem:[%s176 + $0x10] sm:%s169]
                %181 = vst [vmem:[%s177 + $0x4] sm:%s169] %v180
                %v182 = vld [vmem:[%s176 + $0x20] sm:%s169]
                %183 = vst [vmem:[%s177 + $0x8] sm:%s169] %v182
                %v184 = vld [vmem:[%s176 + $0x30] sm:%s169]
                %185 = vst [vmem:[%s177 + $0xc] sm:%s169] %v184
                %v186 = vld [vmem:[%s176 + $0x40] sm:%s169]
                %187 = vst [vmem:[%s177 + $0x10] sm:%s169] %v186
                %v188 = vld [vmem:[%s176 + $0x50] sm:%s169]
                %189 = vst [vmem:[%s177 + $0x14] sm:%s169] %v188
                %v190 = vld [vmem:[%s176 + $0x60] sm:%s169]
                %191 = vst [vmem:[%s177 + $0x18] sm:%s169] %v190
                %v192 = vld [vmem:[%s176 + $0x70] sm:%s169]
                %193 = vst [vmem:[%s177 + $0x1c] sm:%s169] %v192
                %v194 = vld [vmem:[%s176 + $0x80] sm:%s169]
                %195 = vst [vmem:[%s177 + $0x20] sm:%s169] %v194
                %v196 = vld [vmem:[%s176 + $0x90] sm:%s169]
                %197 = vst [vmem:[%s177 + $0x24] sm:%s169] %v196
                %v198 = vld [vmem:[%s176 + $0xa0] sm:%s169]
                %199 = vst [vmem:[%s177 + $0x28] sm:%s169] %v198
                %v200 = vld [vmem:[%s176 + $0xb0] sm:%s169]
                %201 = vst [vmem:[%s177 + $0x2c] sm:%s169] %v200
                %v202 = vld [vmem:[%s176 + $0xc0] sm:%s169]
                %203 = vst [vmem:[%s177 + $0x30] sm:%s169] %v202
                %v204 = vld [vmem:[%s176 + $0xd0] sm:%s169]
                %205 = vst [vmem:[%s177 + $0x34] sm:%s169] %v204
                %v206 = vld [vmem:[%s176 + $0xe0] sm:%s169]
                %207 = vst [vmem:[%s177 + $0x38] sm:%s169] %v206
                %v208 = vld [vmem:[%s176 + $0xf0] sm:%s169]
                %209 = vst [vmem:[%s177 + $0x3c] sm:%s169] %v208
                %v210 = vld [vmem:[%s176 + $0x100] sm:%s169]
                %211 = vst [vmem:[%s177 + $0x40] sm:%s169] %v210
                %v212 = vld [vmem:[%s176 + $0x110] sm:%s169]
                %213 = vst [vmem:[%s177 + $0x44] sm:%s169] %v212
                %v214 = vld [vmem:[%s176 + $0x120] sm:%s169]
                %215 = vst [vmem:[%s177 + $0x48] sm:%s169] %v214
                %v216 = vld [vmem:[%s176 + $0x130] sm:%s169]
                %217 = vst [vmem:[%s177 + $0x4c] sm:%s169] %v216
                %v218 = vld [vmem:[%s176 + $0x140] sm:%s169]
                %219 = vst [vmem:[%s177 + $0x50] sm:%s169] %v218
                %v220 = vld [vmem:[%s176 + $0x150] sm:%s169]
                %221 = vst [vmem:[%s177 + $0x54] sm:%s169] %v220
                %v222 = vld [vmem:[%s176 + $0x160] sm:%s169]
                %223 = vst [vmem:[%s177 + $0x58] sm:%s169] %v222
                %v224 = vld [vmem:[%s176 + $0x170] sm:%s169]
                %225 = vst [vmem:[%s177 + $0x5c] sm:%s169] %v224
                %v226 = vld [vmem:[%s176 + $0x180] sm:%s169]
                %227 = vst [vmem:[%s177 + $0x60] sm:%s169] %v226
                %v228 = vld [vmem:[%s176 + $0x190] sm:%s169]
                %229 = vst [vmem:[%s177 + $0x64] sm:%s169] %v228
                %v230 = vld [vmem:[%s176 + $0x1a0] sm:%s169]
                %231 = vst [vmem:[%s177 + $0x68] sm:%s169] %v230
                %v232 = vld [vmem:[%s176 + $0x1b0] sm:%s169]
                %233 = vst [vmem:[%s177 + $0x6c] sm:%s169] %v232
                %v234 = vld [vmem:[%s176 + $0x1c0] sm:%s169]
                %235 = vst [vmem:[%s177 + $0x70] sm:%s169] %v234
                %v236 = vld [vmem:[%s176 + $0x1d0] sm:%s169]
                %237 = vst [vmem:[%s177 + $0x74] sm:%s169] %v236
                %v238 = vld [vmem:[%s176 + $0x1e0] sm:%s169]
                %239 = vst [vmem:[%s177 + $0x78] sm:%s169] %v238
                %v240 = vld [vmem:[%s176 + $0x1f0] sm:%s169]
                %241 = vst [vmem:[%s177 + $0x7c] sm:%s169] %v240
              $region49: #{dense_net_forward.5} parent=43 // loop_footer
                %s175 = sadd.s32 1, %s171
              $region50: #{dense_net_forward.5} parent=43 // loop_footer_branch
                %170 = sbr.rel target = $region46
              $region51: #{dense_net_forward.5} parent=43 // loop_exit
                _
            $region44: #{dense_net_forward.5} parent=35 // pred_fallthru
              _
          $region36: #{dense_net_forward.5} parent=31 // pred_fallthru
            _
          %326 = vnop
        $region32: #{dense_net_forward.5} parent=27 // pred_fallthru
          _
      $region28: #{dense_net_forward.5} parent=5 // pred_fallthru
        _
      %p327 = scmp.le.s32.totalorder 1, %s10
      %p328 = scmp.lt.s32.totalorder %s10, 5
      %p329 = pnand %p327, %p328
      %p330 = pneg %p329
      // Predicated region
      $region70: #{dense_net_forward.5} parent=5 // pred_check
        _
      $region71: #{dense_net_forward.5} parent=5 // pred_check_branch
        %332 = sbr.rel (%p329) target = $region73
      $region72: #{dense_net_forward.5} parent=5 // pred_region
        %s333 = ssub.s32 %s10, 1
        %s334 = sand.u32 %s44, 1
        %s335 = sand.u32 %s44, 1
        %s336 = smul.addr %s335, 128
        %s337 = scalar_lea.vmem [#allocation2], %s336
        // Predicated region
        $region74: #{dense_net_forward.5} parent=72 // pred_check
          %p338 = pneg %p57
        $region75: #{dense_net_forward.5} parent=72 // pred_check_branch
          %340 = sbr.rel (%p338) target = $region77
        $region76: #{dense_net_forward.5} parent=72 // pred_region
          _
        $region77: #{dense_net_forward.5} parent=72 // pred_fallthru
          _
        %p341 = pneg %p31
        %p342 = pneg %p28
        %s343 = sand.u32 %s44, 1
        %s344 = sand.u32 %s44, 1
        %s345 = smul.addr %s344, 128
        %s346 = scalar_lea.vmem [#allocation2], %s345
        %p347 = pneg %p57
        %p348 = pneg %p54
        %p349 = pneg %p78
        %p350 = pneg %p75
        %p351 = pneg %p99
        %p352 = pneg %p96
        %p353 = pneg %p125
        %p354 = pneg %p122
        %s355 = sand.u32 %s112, 1
        %s356 = sand.u32 %s112, 1
        %s357 = smul.addr %s356, 8
        %s358 = scalar_lea.vmem [#allocation3], %s357
        %v359 = vld [vmem:[%s0] sm:$0xff]
        %v360 = vld [vmem:[%s0 + $0x8] sm:$0xff]
        %v361 = vld [vmem:[%s337] sm:$0xf]
        %v362 = vld [vmem:[%s337 + $0x4] sm:$0xf]
        %v363 = vld [vmem:[%s337 + $0x8] sm:$0xf]
        %v364 = vld [vmem:[%s337 + $0xc] sm:$0xf]
        %v365 = vld [vmem:[%s337 + $0x10] sm:$0xf]
        %v366 = vld [vmem:[%s337 + $0x14] sm:$0xf]
        %v367 = vld [vmem:[%s337 + $0x18] sm:$0xf]
        %v368 = vld [vmem:[%s337 + $0x1c] sm:$0xf]
        %v369 = vld [vmem:[%s337 + $0x20] sm:$0xf]
        %v370 = vld [vmem:[%s337 + $0x24] sm:$0xf]
        %v371 = vld [vmem:[%s337 + $0x28] sm:$0xf]
        %v372 = vld [vmem:[%s337 + $0x2c] sm:$0xf]
        %v373 = vld [vmem:[%s337 + $0x30] sm:$0xf]
        %v374 = vld [vmem:[%s337 + $0x34] sm:$0xf]
        %v375 = vld [vmem:[%s337 + $0x38] sm:$0xf]
        %v376 = vld [vmem:[%s337 + $0x3c] sm:$0xf]
        %v377 = vld [vmem:[%s337 + $0x40] sm:$0xf]
        %v378 = vld [vmem:[%s337 + $0x44] sm:$0xf]
        %v379 = vld [vmem:[%s337 + $0x48] sm:$0xf]
        %v380 = vld [vmem:[%s337 + $0x4c] sm:$0xf]
        %v381 = vld [vmem:[%s337 + $0x50] sm:$0xf]
        %v382 = vld [vmem:[%s337 + $0x54] sm:$0xf]
        %v383 = vld [vmem:[%s337 + $0x58] sm:$0xf]
        %v384 = vld [vmem:[%s337 + $0x5c] sm:$0xf]
        %v385 = vld [vmem:[%s337 + $0x60] sm:$0xf]
        %v386 = vld [vmem:[%s337 + $0x64] sm:$0xf]
        %v387 = vld [vmem:[%s337 + $0x68] sm:$0xf]
        %v388 = vld [vmem:[%s337 + $0x6c] sm:$0xf]
        %v389 = vld [vmem:[%s337 + $0x70] sm:$0xf]
        %v390 = vld [vmem:[%s337 + $0x74] sm:$0xf]
        %v391 = vld [vmem:[%s337 + $0x78] sm:$0xf]
        %v392 = vld [vmem:[%s337 + $0x7c] sm:$0xf]
        %v395 = vunpack.c.l.b16 %v359
        %v396 = vunpack.c.h.b16 %v359
        %v397 = vunpack.c.l.b16 %v360
        %v398 = vunpack.c.h.b16 %v360
        %v399 = vpack.c.b16 %v397, %v395
        %v400 = vpack.c.b16 %v398, %v396
        %v435 = vunpack.c.l.b16 %v361
        %v436 = vunpack.c.l.b16 %v362
        %v437 = vunpack.c.l.b16 %v363
        %v438 = vunpack.c.l.b16 %v364
        %v439 = vunpack.c.l.b16 %v365
        %v440 = vunpack.c.l.b16 %v366
        %v441 = vunpack.c.l.b16 %v367
        %v442 = vunpack.c.l.b16 %v368
        %v443 = vunpack.c.l.b16 %v369
        %v444 = vunpack.c.l.b16 %v370
        %v445 = vunpack.c.l.b16 %v371
        %v446 = vunpack.c.l.b16 %v372
        %v447 = vunpack.c.l.b16 %v373
        %v448 = vunpack.c.l.b16 %v374
        %v449 = vunpack.c.l.b16 %v375
        %v450 = vunpack.c.l.b16 %v376
        %v451 = vunpack.c.l.b16 %v377
        %v452 = vunpack.c.l.b16 %v378
        %v453 = vunpack.c.l.b16 %v379
        %v454 = vunpack.c.l.b16 %v380
        %v455 = vunpack.c.l.b16 %v381
        %v456 = vunpack.c.l.b16 %v382
        %v457 = vunpack.c.l.b16 %v383
        %v458 = vunpack.c.l.b16 %v384
        %v459 = vunpack.c.l.b16 %v385
        %v460 = vunpack.c.l.b16 %v386
        %v461 = vunpack.c.l.b16 %v387
        %v462 = vunpack.c.l.b16 %v388
        %v463 = vunpack.c.l.b16 %v389
        %v464 = vunpack.c.l.b16 %v390
        %v465 = vunpack.c.l.b16 %v391
        %v466 = vunpack.c.l.b16 %v392
        %v467 = vpack.c.b16 %v436, %v435
        %v468 = vpack.c.b16 %v438, %v437
        %v469 = vpack.c.b16 %v440, %v439
        %v470 = vpack.c.b16 %v442, %v441
        %v471 = vpack.c.b16 %v444, %v443
        %v472 = vpack.c.b16 %v446, %v445
        %v473 = vpack.c.b16 %v448, %v447
        %v474 = vpack.c.b16 %v450, %v449
        %v475 = vpack.c.b16 %v452, %v451
        %v476 = vpack.c.b16 %v454, %v453
        %v477 = vpack.c.b16 %v456, %v455
        %v478 = vpack.c.b16 %v458, %v457
        %v479 = vpack.c.b16 %v460, %v459
        %v480 = vpack.c.b16 %v462, %v461
        %v481 = vpack.c.b16 %v464, %v463
        %v482 = vpack.c.b16 %v466, %v465
        %499 = vmatpush.bf16.msra.mxu0 %v474
        %500 = vmatpush.bf16.msra.mxu0 %v473
        %501 = vmatpush.bf16.msra.mxu0 %v472
        %502 = vmatpush.bf16.msra.mxu0 %v471
        %503 = vmatpush.bf16.msra.mxu0 %v470
        %504 = vmatpush.bf16.msra.mxu0 %v469
        %505 = vmatpush.bf16.msra.mxu0 %v468
        %506 = vmatpush.bf16.msra.mxu0 %v467
        %507 = vmatmul.bf16.gmra.mxu0 %v399
        %v508 = vpop.f32.mrf.mxu0
        %v509 = vadd.f32 0.0, %v508
        %v510 = vpop.f32.mrf.mxu0
        %v511 = vadd.f32 0.0, %v510
        %512 = vdwg.mxu0
        %513 = vmatpush.bf16.msra.mxu0 %v482
        %514 = vmatpush.bf16.msra.mxu0 %v481
        %515 = vmatpush.bf16.msra.mxu0 %v480
        %516 = vmatpush.bf16.msra.mxu0 %v479
        %517 = vmatpush.bf16.msra.mxu0 %v478
        %518 = vmatpush.bf16.msra.mxu0 %v477
        %519 = vmatpush.bf16.msra.mxu0 %v476
        %520 = vmatpush.bf16.msra.mxu0 %v475
        %521 = vmatmul.bf16.gmra.mxu0 %v400
        %v522 = vpop.f32.mrf.mxu0
        %v523 = vadd.f32 %v509, %v522
        %v524 = vpop.f32.mrf.mxu0
        %v525 = vadd.f32 %v511, %v524
        %526 = vdwg.mxu0
        %v527 = vld [vmem:[%s2] sm:$0xff]
        %v528 = vld [vmem:[%s2 + $0x8] sm:$0xff]
        %530 = vset.pattern.permute.xlu0 0
        %531 = vperm.xlu0 %530, %v527
        %v532 = vpop.permute.xlu0 %531
        %535 = vset.pattern.permute.xlu0 0
        %536 = vperm.xlu0 %535, %v528
        %v537 = vpop.permute.xlu0 %536
        %v539 = vmul.f32 %v523, %v532
        %v540 = vmul.f32 %v525, %v537
        %v541 = vld [vmem:[%s3] sm:$0xff]
        %v542 = vld [vmem:[%s3 + $0x8] sm:$0xff]
        %544 = vset.pattern.permute.xlu0 0
        %545 = vperm.xlu0 %544, %v541
        %v546 = vpop.permute.xlu0 %545
        %549 = vset.pattern.permute.xlu0 0
        %550 = vperm.xlu0 %549, %v542
        %v551 = vpop.permute.xlu0 %550
        %v553 = vadd.f32 %v539, %v546
        %v554 = vadd.f32 %v540, %v551
        %v555 = vmax.f32 %v553, 0.0
        %v556 = vmax.f32 %v554, 0.0
        %v557 = vpack.c.bf16 %v555, %v555
        %v558 = vpack.c.bf16 %v556, %v556
        %559 = vst [vmem:[%s358] sm:$0xf] %v557
        %560 = vst [vmem:[%s358 + $0x4] sm:$0xf] %v558
        %s561 = sand.u32 %s112, 1
        %s562 = sand.u32 %s112, 1
        %s563 = smul.addr %s562, 8
        %s564 = scalar_lea.vmem [#allocation3], %s563
        // Predicated region
        $region78: #{dense_net_forward.5} parent=72 // pred_check
          %p565 = pneg %p122
        $region79: #{dense_net_forward.5} parent=72 // pred_check_branch
          %567 = sbr.rel (%p565) target = $region81
        $region80: #{dense_net_forward.5} parent=72 // pred_region
          %s568 = smul.addr %s15, 4
          %s569 = scalar_lea.vmem %s4, %s568
          // Predicated region
          $region82: #{dense_net_forward.5} parent=80 // pred_check
            _
          $region83: #{dense_net_forward.5} parent=80 // pred_check_branch
            %571 = sbr.rel (0) target = $region85
          $region84: #{dense_net_forward.5} parent=80 // pred_region
            // Predicated region
            $region86: #{dense_net_forward.5} parent=84 // pred_check
              _
            $region87: #{dense_net_forward.5} parent=84 // pred_check_branch
              %573 = sbr.rel target = $region89
            $region88: #{dense_net_forward.5} parent=84 // pred_region
              // Predicated region
              $region101: #{dense_net_forward.5} parent=88 // pred_check
                _
              $region102: #{dense_net_forward.5} parent=88 // pred_check_branch
                %591 = sbr.rel (0) target = $region104
              $region103: #{dense_net_forward.5} parent=88 // pred_region
                loop: start=0, step=1, limit=1
                $region105: #{dense_net_forward.5} parent=103 // loop_pre_header
                  _
                $region106: #{dense_net_forward.5} parent=103 // loop_header
                  %s593 = sphi 0, %s597
                  %p594 = scmp.ge.s32.totalorder %s593, 1
                  %s598 = sphi %s564, %s564
                  %s599 = sphi %s569, %s569
                $region107: #{dense_net_forward.5} parent=103 // loop_header_branch
                  %596 = sbr.rel (%p594) target = $region111
                $region108: #{dense_net_forward.5} parent=103 // loop_body
                  _
                $region109: #{dense_net_forward.5} parent=103 // loop_footer
                  %s597 = sadd.s32 1, %s593
                $region110: #{dense_net_forward.5} parent=103 // loop_footer_branch
                  %592 = sbr.rel target = $region106
                $region111: #{dense_net_forward.5} parent=103 // loop_exit
                  _
                %s601 = ssub.s32 16, 1
                loop: start=0, step=1, limit=1
                $region112: #{dense_net_forward.5} parent=103 // loop_pre_header
                  _
                $region113: #{dense_net_forward.5} parent=103 // loop_header
                  %s603 = sphi 0, %s607
                  %p604 = scmp.ge.s32.totalorder %s603, 1
                  %s608 = sphi %s564, %s564
                  %s609 = sphi %s569, %s569
                $region114: #{dense_net_forward.5} parent=103 // loop_header_branch
                  %606 = sbr.rel (%p604) target = $region118
                $region115: #{dense_net_forward.5} parent=103 // loop_body
                  %v610 = vld [vmem:[%s608] sm:%s601]
                  %611 = vst [vmem:[%s609] sm:%s601] %v610
                  %v612 = vld [vmem:[%s608 + $0x4] sm:%s601]
                  %613 = vst [vmem:[%s609 + $0x10] sm:%s601] %v612
                $region116: #{dense_net_forward.5} parent=103 // loop_footer
                  %s607 = sadd.s32 1, %s603
                $region117: #{dense_net_forward.5} parent=103 // loop_footer_branch
                  %602 = sbr.rel target = $region113
                $region118: #{dense_net_forward.5} parent=103 // loop_exit
                  _
              $region104: #{dense_net_forward.5} parent=88 // pred_fallthru
                _
            $region89: #{dense_net_forward.5} parent=84 // pred_fallthru
              _
            // Predicated region
            $region90: #{dense_net_forward.5} parent=84 // pred_check
              _
            $region91: #{dense_net_forward.5} parent=84 // pred_check_branch
              %575 = sbr.rel (0) target = $region93
            $region92: #{dense_net_forward.5} parent=84 // pred_region
              %s577 = ssub.s32 16, 1
              loop: start=0, step=1, limit=1
              $region94: #{dense_net_forward.5} parent=92 // loop_pre_header
                _
              $region95: #{dense_net_forward.5} parent=92 // loop_header
                %s579 = sphi 0, %s583
                %p580 = scmp.ge.s32.totalorder %s579, 1
                %s584 = sphi %s564, %s564
                %s585 = sphi %s569, %s569
              $region96: #{dense_net_forward.5} parent=92 // loop_header_branch
                %582 = sbr.rel (%p580) target = $region100
              $region97: #{dense_net_forward.5} parent=92 // loop_body
                %v586 = vld [vmem:[%s584] sm:%s577]
                %587 = vst [vmem:[%s585] sm:%s577] %v586
                %v588 = vld [vmem:[%s584 + $0x4] sm:%s577]
                %589 = vst [vmem:[%s585 + $0x10] sm:%s577] %v588
              $region98: #{dense_net_forward.5} parent=92 // loop_footer
                %s583 = sadd.s32 1, %s579
              $region99: #{dense_net_forward.5} parent=92 // loop_footer_branch
                %578 = sbr.rel target = $region95
              $region100: #{dense_net_forward.5} parent=92 // loop_exit
                _
            $region93: #{dense_net_forward.5} parent=84 // pred_fallthru
              _
          $region85: #{dense_net_forward.5} parent=80 // pred_fallthru
            _
          %614 = vnop
        $region81: #{dense_net_forward.5} parent=72 // pred_fallthru
          _
      $region73: #{dense_net_forward.5} parent=5 // pred_fallthru
        _
      %p615 = scmp.le.s32.totalorder 2, %s10
      // Predicated region
      $region119: #{dense_net_forward.5} parent=5 // pred_check
        %p616 = pneg %p615
      $region120: #{dense_net_forward.5} parent=5 // pred_check_branch
        %618 = sbr.rel (%p616) target = $region122
      $region121: #{dense_net_forward.5} parent=5 // pred_region
        %s619 = ssub.s32 %s10, 2
        // Predicated region
        $region123: #{dense_net_forward.5} parent=121 // pred_check
          %p620 = pneg %p128
        $region124: #{dense_net_forward.5} parent=121 // pred_check_branch
          %622 = sbr.rel (%p620) target = $region126
        $region125: #{dense_net_forward.5} parent=121 // pred_region
          %s623 = sand.u32 %s113, 1
          %s624 = sand.u32 %s113, 1
          %s625 = smul.addr %s624, 8
          %s626 = scalar_lea.vmem [#allocation3], %s625
        $region126: #{dense_net_forward.5} parent=121 // pred_fallthru
          _
      $region122: #{dense_net_forward.5} parent=5 // pred_fallthru
        _
    $region6: #{dense_net_forward.5} parent=1 // loop_footer
      %s14 = sadd.s32 1, %s10
    $region7: #{dense_net_forward.5} parent=1 // loop_footer_branch
      %9 = sbr.rel target = $region3
    $region8: #{dense_net_forward.5} parent=1 // loop_exit
      _

// kernel: dense_net_forward.7
$region0: #{dense_net_forward.7}
  #allocation0 [shape = 'u32[]', space=smem, size = 0x4, offset = 0x4, fixed_abs, tag = 'smem constant byte address 0x4 - core index']
  #allocation1 [shape = 'u32[72,128]{1,0:T(1,128)}', space=vmem, size = 0x9000, scoped, tag = 'internal scratch']
  %s0 = inlined_call_operand.vmem [shape: bf16[32,128], index: 0, kind: input, shape index: {}]
  %s1 = inlined_call_operand.vmem [shape: f32[32,1], index: 1, kind: input, shape index: {}]
  %s2 = inlined_call_operand.vmem [shape: f32[32,1], index: 2, kind: input, shape index: {}]
  %s3 = inlined_call_operand.vmem [shape: bf16[16,32], index: 3, kind: input, shape index: {}]
  %s4 = inlined_call_operand.vmem [shape: bf16[16,128], index: 4, kind: output, shape index: {}]
  %s5 = sld [smem:[#allocation0]]
  $region26: #{dense_net_forward.7} parent=0
    _
  %s7 = ssub.s32 1, %s5
  %s8 = scalar_select 0, %s7, %s5
  // Predicated region
  $region2: #{dense_net_forward.7} parent=0 // pred_check
    _
  $region3: #{dense_net_forward.7} parent=0 // pred_check_branch
    %10 = sbr.rel (0) target = $region5
  $region4: #{dense_net_forward.7} parent=0 // pred_region
    _
  $region5: #{dense_net_forward.7} parent=0 // pred_fallthru
    _
  // Predicated region
  $region6: #{dense_net_forward.7} parent=0 // pred_check
    _
  $region7: #{dense_net_forward.7} parent=0 // pred_check_branch
    %12 = sbr.rel (0) target = $region9
  $region8: #{dense_net_forward.7} parent=0 // pred_region
    _
  $region9: #{dense_net_forward.7} parent=0 // pred_fallthru
    _
  // Predicated region
  $region10: #{dense_net_forward.7} parent=0 // pred_check
    _
  $region11: #{dense_net_forward.7} parent=0 // pred_check_branch
    %14 = sbr.rel (0) target = $region13
  $region12: #{dense_net_forward.7} parent=0 // pred_region
    _
  $region13: #{dense_net_forward.7} parent=0 // pred_fallthru
    _
  // Predicated region
  $region14: #{dense_net_forward.7} parent=0 // pred_check
    _
  $region15: #{dense_net_forward.7} parent=0 // pred_check_branch
    %16 = sbr.rel (0) target = $region17
  $region16: #{dense_net_forward.7} parent=0 // pred_region
    _
  $region17: #{dense_net_forward.7} parent=0 // pred_fallthru
    _
  %v18 = vld [vmem:[%s0] sm:$0xf]
  %v19 = vld [vmem:[%s0 + $0x4] sm:$0xf]
  %v20 = vld [vmem:[%s0 + $0x8] sm:$0xf]
  %v21 = vld [vmem:[%s0 + $0xc] sm:$0xf]
  %v22 = vunpack.c.l.bf16 %v18
  %v23 = vunpack.c.l.bf16 %v19
  %v24 = vunpack.c.l.bf16 %v20
  %v25 = vunpack.c.l.bf16 %v21
  %v26 = vld [vmem:[%s1] sm:$0xff]
  %v27 = vld [vmem:[%s1 + $0x8] sm:$0xff]
  %v28 = vld [vmem:[%s1 + $0x10] sm:$0xff]
  %v29 = vld [vmem:[%s1 + $0x18] sm:$0xff]
  %31 = vset.pattern.permute.xlu0 0
  %32 = vperm.xlu0 %31, %v26
  %v33 = vpop.permute.xlu0 %32
  %36 = vset.pattern.permute.xlu0 0
  %37 = vperm.xlu0 %36, %v27
  %v38 = vpop.permute.xlu0 %37
  %41 = vset.pattern.permute.xlu0 0
  %42 = vperm.xlu0 %41, %v28
  %v43 = vpop.permute.xlu0 %42
  %46 = vset.pattern.permute.xlu0 0
  %47 = vperm.xlu0 %46, %v29
  %v48 = vpop.permute.xlu0 %47
  %v50 = vmul.f32 %v22, %v33
  %v51 = vmul.f32 %v23, %v38
  %v52 = vmul.f32 %v24, %v43
  %v53 = vmul.f32 %v25, %v48
  %v54 = vld [vmem:[%s2] sm:$0xff]
  %v55 = vld [vmem:[%s2 + $0x8] sm:$0xff]
  %v56 = vld [vmem:[%s2 + $0x10] sm:$0xff]
  %v57 = vld [vmem:[%s2 + $0x18] sm:$0xff]
  %59 = vset.pattern.permute.xlu0 0
  %60 = vperm.xlu0 %59, %v54
  %v61 = vpop.permute.xlu0 %60
  %64 = vset.pattern.permute.xlu0 0
  %65 = vperm.xlu0 %64, %v55
  %v66 = vpop.permute.xlu0 %65
  %69 = vset.pattern.permute.xlu0 0
  %70 = vperm.xlu0 %69, %v56
  %v71 = vpop.permute.xlu0 %70
  %74 = vset.pattern.permute.xlu0 0
  %75 = vperm.xlu0 %74, %v57
  %v76 = vpop.permute.xlu0 %75
  %v78 = vadd.f32 %v50, %v61
  %v79 = vadd.f32 %v51, %v66
  %v80 = vadd.f32 %v52, %v71
  %v81 = vadd.f32 %v53, %v76
  %v82 = vmax.f32 %v78, 0.0
  %v83 = vmax.f32 %v79, 0.0
  %v84 = vmax.f32 %v80, 0.0
  %v85 = vmax.f32 %v81, 0.0
  %v86 = vld [vmem:[%s3] sm:$0xf]
  %v87 = vld [vmem:[%s3 + $0x4] sm:$0xf]
  %v88 = vpack.c.bf16 %v83, %v82
  %v89 = vpack.c.bf16 %v85, %v84
  %v92 = vunpack.c.l.b16 %v86
  %v93 = vunpack.c.l.b16 %v87
  %v94 = vpack.c.b16 %v93, %v92
  %vm95 = vcmask 261120
  %v97 = vsel %vm95, %v94, 0
  %99 = vmatpush.bf16.msra.mxu0 0
  %100 = vmatpush.bf16.msra.mxu0 0
  %101 = vmatpush.bf16.msra.mxu0 0
  %102 = vmatpush.bf16.msra.mxu0 0
  %103 = vmatpush.bf16.msra.mxu0 0
  %104 = vmatpush.bf16.msra.mxu0 0
  %105 = vmatpush.bf16.msra.mxu0 %v89
  %106 = vmatpush.bf16.msra.mxu0 %v88
  %107 = vmatmul.bf16.gmra.mxu0 %v97
  %v108 = vpop.f32.mrf.mxu0
  %v109 = vadd.f32 0.0, %v108
  %v110 = vpop.f32.mrf.mxu0
  %v111 = vadd.f32 0.0, %v110
  %112 = vdwg.mxu0
  %v113 = vpack.c.bf16 %v109, %v109
  %v114 = vpack.c.bf16 %v111, %v111
  %115 = vst [vmem:[%s4] sm:$0xf] %v113
  %116 = vst [vmem:[%s4 + $0x4] sm:$0xf] %v114
  // Predicated region
  $region18: #{dense_net_forward.7} parent=0 // pred_check
    _
  $region19: #{dense_net_forward.7} parent=0 // pred_check_branch
    %118 = sbr.rel (0) target = $region21
  $region20: #{dense_net_forward.7} parent=0 // pred_region
    _
  $region21: #{dense_net_forward.7} parent=0 // pred_fallthru
    _
  // Predicated region
  $region22: #{dense_net_forward.7} parent=0 // pred_check
    _
  $region23: #{dense_net_forward.7} parent=0 // pred_check_branch
    %120 = sbr.rel (0) target = $region25
  $region24: #{dense_net_forward.7} parent=0 // pred_region
    _
  $region25: #{dense_net_forward.7} parent=0 // pred_fallthru
    _

// kernel: dense_net_forward.6
$region0: #{dense_net_forward.6}
  #allocation0 [shape = 'u32[]', space=smem, size = 0x4, offset = 0x4, fixed_abs, tag = 'smem constant byte address 0x4 - core index']
  #allocation1 [shape = 'u32[72,128]{1,0:T(1,128)}', space=vmem, size = 0x9000, scoped, tag = 'internal scratch']
  #allocation2 [shape = 'f32[32,128]{1,0:T(8,128)}', space=vmem, size = 0x4000, scoped, tag = 'scratch operand']
  %s0 = inlined_call_operand.vmem [shape: bf16[16,128], index: 0, kind: input, shape index: {}]
  %s1 = inlined_call_operand.vmem [shape: f32[16,1], index: 1, kind: input, shape index: {}]
  %s2 = inlined_call_operand.vmem [shape: f32[16,1], index: 2, kind: input, shape index: {}]
  %s3 = inlined_call_operand.vmem [shape: bf16[16,16], index: 3, kind: input, shape index: {}]
  %s4 = inlined_call_operand.vmem [shape: f32[16,1], index: 4, kind: input, shape index: {}]
  %s5 = inlined_call_operand.vmem [shape: f32[16,1], index: 5, kind: input, shape index: {}]
  %s6 = inlined_call_operand.vmem [shape: bf16[8,16], index: 6, kind: input, shape index: {}]
  %s7 = inlined_call_operand.vmem [shape: f32[8,1], index: 7, kind: input, shape index: {}]
  %s8 = inlined_call_operand.vmem [shape: f32[24,1], index: 8, kind: input, shape index: {}]
  %s9 = inlined_call_operand.vmem [shape: f32[24,1], index: 9, kind: input, shape index: {}]
  %s10 = inlined_call_operand.vmem [shape: bf16[16,24], index: 10, kind: input, shape index: {}]
  %s11 = inlined_call_operand.vmem [shape: f32[16,1], index: 11, kind: input, shape index: {}]
  %s12 = inlined_call_operand.vmem [shape: f32[16,1], index: 12, kind: input, shape index: {}]
  %s13 = inlined_call_operand.vmem [shape: bf16[8,16], index: 13, kind: input, shape index: {}]
  %s14 = inlined_call_operand.vmem [shape: f32[8,1], index: 14, kind: input, shape index: {}]
  %s15 = inlined_call_operand.vmem [shape: bf16[32,128], index: 15, kind: output, shape index: {}]
  %s16 = sld [smem:[#allocation0]]
  $region70: #{dense_net_forward.6} parent=0
    _
  %s18 = ssub.s32 1, %s16
  %s19 = scalar_select 0, %s18, %s16
  // Predicated region
  $region2: #{dense_net_forward.6} parent=0 // pred_check
    _
  $region3: #{dense_net_forward.6} parent=0 // pred_check_branch
    %21 = sbr.rel (0) target = $region5
  $region4: #{dense_net_forward.6} parent=0 // pred_region
    _
  $region5: #{dense_net_forward.6} parent=0 // pred_fallthru
    _
  // Predicated region
  $region6: #{dense_net_forward.6} parent=0 // pred_check
    _
  $region7: #{dense_net_forward.6} parent=0 // pred_check_branch
    %23 = sbr.rel (0) target = $region9
  $region8: #{dense_net_forward.6} parent=0 // pred_region
    _
  $region9: #{dense_net_forward.6} parent=0 // pred_fallthru
    _
  // Predicated region
  $region10: #{dense_net_forward.6} parent=0 // pred_check
    _
  $region11: #{dense_net_forward.6} parent=0 // pred_check_branch
    %25 = sbr.rel (0) target = $region13
  $region12: #{dense_net_forward.6} parent=0 // pred_region
    _
  $region13: #{dense_net_forward.6} parent=0 // pred_fallthru
    _
  // Predicated region
  $region14: #{dense_net_forward.6} parent=0 // pred_check
    _
  $region15: #{dense_net_forward.6} parent=0 // pred_check_branch
    %27 = sbr.rel (0) target = $region17
  $region16: #{dense_net_forward.6} parent=0 // pred_region
    _
  $region17: #{dense_net_forward.6} parent=0 // pred_fallthru
    _
  // Predicated region
  $region18: #{dense_net_forward.6} parent=0 // pred_check
    _
  $region19: #{dense_net_forward.6} parent=0 // pred_check_branch
    %29 = sbr.rel (0) target = $region21
  $region20: #{dense_net_forward.6} parent=0 // pred_region
    _
  $region21: #{dense_net_forward.6} parent=0 // pred_fallthru
    _
  // Predicated region
  $region22: #{dense_net_forward.6} parent=0 // pred_check
    _
  $region23: #{dense_net_forward.6} parent=0 // pred_check_branch
    %31 = sbr.rel (0) target = $region25
  $region24: #{dense_net_forward.6} parent=0 // pred_region
    _
  $region25: #{dense_net_forward.6} parent=0 // pred_fallthru
    _
  // Predicated region
  $region26: #{dense_net_forward.6} parent=0 // pred_check
    _
  $region27: #{dense_net_forward.6} parent=0 // pred_check_branch
    %33 = sbr.rel (0) target = $region29
  $region28: #{dense_net_forward.6} parent=0 // pred_region
    _
  $region29: #{dense_net_forward.6} parent=0 // pred_fallthru
    _
  // Predicated region
  $region30: #{dense_net_forward.6} parent=0 // pred_check
    _
  $region31: #{dense_net_forward.6} parent=0 // pred_check_branch
    %35 = sbr.rel (0) target = $region33
  $region32: #{dense_net_forward.6} parent=0 // pred_region
    _
  $region33: #{dense_net_forward.6} parent=0 // pred_fallthru
    _
  // Predicated region
  $region34: #{dense_net_forward.6} parent=0 // pred_check
    _
  $region35: #{dense_net_forward.6} parent=0 // pred_check_branch
    %37 = sbr.rel (0) target = $region37
  $region36: #{dense_net_forward.6} parent=0 // pred_region
    _
  $region37: #{dense_net_forward.6} parent=0 // pred_fallthru
    _
  // Predicated region
  $region38: #{dense_net_forward.6} parent=0 // pred_check
    _
  $region39: #{dense_net_forward.6} parent=0 // pred_check_branch
    %39 = sbr.rel (0) target = $region41
  $region40: #{dense_net_forward.6} parent=0 // pred_region
    _
  $region41: #{dense_net_forward.6} parent=0 // pred_fallthru
    _
  // Predicated region
  $region42: #{dense_net_forward.6} parent=0 // pred_check
    _
  $region43: #{dense_net_forward.6} parent=0 // pred_check_branch
    %41 = sbr.rel (0) target = $region45
  $region44: #{dense_net_forward.6} parent=0 // pred_region
    _
  $region45: #{dense_net_forward.6} parent=0 // pred_fallthru
    _
  // Predicated region
  $region46: #{dense_net_forward.6} parent=0 // pred_check
    _
  $region47: #{dense_net_forward.6} parent=0 // pred_check_branch
    %43 = sbr.rel (0) target = $region49
  $region48: #{dense_net_forward.6} parent=0 // pred_region
    _
  $region49: #{dense_net_forward.6} parent=0 // pred_fallthru
    _
  // Predicated region
  $region50: #{dense_net_forward.6} parent=0 // pred_check
    _
  $region51: #{dense_net_forward.6} parent=0 // pred_check_branch
    %45 = sbr.rel (0) target = $region53
  $region52: #{dense_net_forward.6} parent=0 // pred_region
    _
  $region53: #{dense_net_forward.6} parent=0 // pred_fallthru
    _
  // Predicated region
  $region54: #{dense_net_forward.6} parent=0 // pred_check
    _
  $region55: #{dense_net_forward.6} parent=0 // pred_check_branch
    %47 = sbr.rel (0) target = $region57
  $region56: #{dense_net_forward.6} parent=0 // pred_region
    _
  $region57: #{dense_net_forward.6} parent=0 // pred_fallthru
    _
  // Predicated region
  $region58: #{dense_net_forward.6} parent=0 // pred_check
    _
  $region59: #{dense_net_forward.6} parent=0 // pred_check_branch
    %49 = sbr.rel (0) target = $region61
  $region60: #{dense_net_forward.6} parent=0 // pred_region
    _
  $region61: #{dense_net_forward.6} parent=0 // pred_fallthru
    _
  %v51 = vld [vmem:[%s0] sm:$0xf]
  %v52 = vld [vmem:[%s0 + $0x4] sm:$0xf]
  %v53 = vunpack.c.l.bf16 %v51
  %v54 = vunpack.c.l.bf16 %v52
  %55 = vst [vmem:[#allocation2] sm:$0xff] %v53
  %56 = vst [vmem:[#allocation2 + $0x8] sm:$0xff] %v54
  %v57 = vld [vmem:[#allocation2] sm:$0xff]
  %v58 = vld [vmem:[#allocation2 + $0x8] sm:$0xff]
  %v59 = vld [vmem:[%s1] sm:$0xff]
  %v60 = vld [vmem:[%s1 + $0x8] sm:$0xff]
  %62 = vset.pattern.permute.xlu0 0
  %63 = vperm.xlu0 %62, %v59
  %v64 = vpop.permute.xlu0 %63
  %67 = vset.pattern.permute.xlu0 0
  %68 = vperm.xlu0 %67, %v60
  %v69 = vpop.permute.xlu0 %68
  %v71 = vmul.f32 %v57, %v64
  %v72 = vmul.f32 %v58, %v69
  %v73 = vld [vmem:[%s2] sm:$0xff]
  %v74 = vld [vmem:[%s2 + $0x8] sm:$0xff]
  %76 = vset.pattern.permute.xlu0 0
  %77 = vperm.xlu0 %76, %v73
  %v78 = vpop.permute.xlu0 %77
  %81 = vset.pattern.permute.xlu0 0
  %82 = vperm.xlu0 %81, %v74
  %v83 = vpop.permute.xlu0 %82
  %v85 = vadd.f32 %v71, %v78
  %v86 = vadd.f32 %v72, %v83
  %v87 = vmax.f32 %v85, 0.0
  %v88 = vmax.f32 %v86, 0.0
  %v89 = vld [vmem:[%s3] sm:$0xf]
  %v90 = vld [vmem:[%s3 + $0x4] sm:$0xf]
  %v91 = vpack.c.bf16 %v88, %v87
  %v94 = vunpack.c.l.b16 %v89
  %v95 = vunpack.c.l.b16 %v90
  %v96 = vpack.c.b16 %v95, %v94
  %vm97 = vcmask 130048
  %v99 = vsel %vm97, %v96, 0
  %101 = vmatpush.bf16.msra.mxu0 0
  %102 = vmatpush.bf16.msra.mxu0 0
  %103 = vmatpush.bf16.msra.mxu0 0
  %104 = vmatpush.bf16.msra.mxu0 0
  %105 = vmatpush.bf16.msra.mxu0 0
  %106 = vmatpush.bf16.msra.mxu0 0
  %107 = vmatpush.bf16.msra.mxu0 0
  %108 = vmatpush.bf16.msra.mxu0 %v91
  %109 = vmatmul.bf16.gmra.mxu0 %v99
  %v110 = vpop.f32.mrf.mxu0
  %v111 = vadd.f32 0.0, %v110
  %v112 = vpop.f32.mrf.mxu0
  %v113 = vadd.f32 0.0, %v112
  %114 = vdwg.mxu0
  %v115 = vld [vmem:[%s4] sm:$0xff]
  %v116 = vld [vmem:[%s4 + $0x8] sm:$0xff]
  %118 = vset.pattern.permute.xlu0 0
  %119 = vperm.xlu0 %118, %v115
  %v120 = vpop.permute.xlu0 %119
  %123 = vset.pattern.permute.xlu0 0
  %124 = vperm.xlu0 %123, %v116
  %v125 = vpop.permute.xlu0 %124
  %v127 = vmul.f32 %v111, %v120
  %v128 = vmul.f32 %v113, %v125
  %v129 = vld [vmem:[%s5] sm:$0xff]
  %v130 = vld [vmem:[%s5 + $0x8] sm:$0xff]
  %132 = vset.pattern.permute.xlu0 0
  %133 = vperm.xlu0 %132, %v129
  %v134 = vpop.permute.xlu0 %133
  %137 = vset.pattern.permute.xlu0 0
  %138 = vperm.xlu0 %137, %v130
  %v139 = vpop.permute.xlu0 %138
  %v141 = vadd.f32 %v127, %v134
  %v142 = vadd.f32 %v128, %v139
  %v143 = vmax.f32 %v141, 0.0
  %v144 = vmax.f32 %v142, 0.0
  %v145 = vld [vmem:[%s6] sm:$0xf]
  %v146 = vpack.c.bf16 %v144, %v143
  %v147 = vld [vmem:[%s7] sm:$0xff]
  %149 = vset.pattern.permute.xlu0 0
  %150 = vperm.xlu0 %149, %v147
  %v151 = vpop.permute.xlu0 %150
  %v154 = vsel %vm97, %v145, 0
  %156 = vmatpush.bf16.msra.mxu0 0
  %157 = vmatpush.bf16.msra.mxu0 0
  %158 = vmatpush.bf16.msra.mxu0 0
  %159 = vmatpush.bf16.msra.mxu0 0
  %160 = vmatpush.bf16.msra.mxu0 0
  %161 = vmatpush.bf16.msra.mxu0 0
  %162 = vmatpush.bf16.msra.mxu0 0
  %163 = vmatpush.bf16.msra.mxu0 %v146
  %164 = vmatmul.bf16.gmra.mxu0 %v154
  %v165 = vpop.f32.mrf.mxu0
  %v166 = vadd.f32 %v151, %v165
  %v167 = vpop.f32.mrf.mxu0
  %168 = vdwg.mxu0
  %169 = vst [vmem:[#allocation2 + $0x10] sm:$0xff] %v166
  %v170 = vld [vmem:[#allocation2] sm:$0xff]
  %v171 = vld [vmem:[#allocation2 + $0x8] sm:$0xff]
  %v172 = vld [vmem:[#allocation2 + $0x10] sm:$0xff]
  %v173 = vld [vmem:[%s8] sm:$0xff]
  %v174 = vld [vmem:[%s8 + $0x8] sm:$0xff]
  %v175 = vld [vmem:[%s8 + $0x10] sm:$0xff]
  %177 = vset.pattern.permute.xlu0 0
  %178 = vperm.xlu0 %177, %v173
  %v179 = vpop.permute.xlu0 %178
  %182 = vset.pattern.permute.xlu0 0
  %183 = vperm.xlu0 %182, %v174
  %v184 = vpop.permute.xlu0 %183
  %187 = vset.pattern.permute.xlu0 0
  %188 = vperm.xlu0 %187, %v175
  %v189 = vpop.permute.xlu0 %188
  %v191 = vmul.f32 %v170, %v179
  %v192 = vmul.f32 %v171, %v184
  %v193 = vmul.f32 %v172, %v189
  %v194 = vld [vmem:[%s9] sm:$0xff]
  %v195 = vld [vmem:[%s9 + $0x8] sm:$0xff]
  %v196 = vld [vmem:[%s9 + $0x10] sm:$0xff]
  %198 = vset.pattern.permute.xlu0 0
  %199 = vperm.xlu0 %198, %v194
  %v200 = vpop.permute.xlu0 %199
  %203 = vset.pattern.permute.xlu0 0
  %204 = vperm.xlu0 %203, %v195
  %v205 = vpop.permute.xlu0 %204
  %208 = vset.pattern.permute.xlu0 0
  %209 = vperm.xlu0 %208, %v196
  %v210 = vpop.permute.xlu0 %209
  %v212 = vadd.f32 %v191, %v200
  %v213 = vadd.f32 %v192, %v205
  %v214 = vadd.f32 %v193, %v210
  %v215 = vmax.f32 %v212, 0.0
  %v216 = vmax.f32 %v213, 0.0
  %v217 = vmax.f32 %v214, 0.0
  %v218 = vld [vmem:[%s10] sm:$0xf]
  %v219 = vld [vmem:[%s10 + $0x4] sm:$0xf]
  %v220 = vpack.c.bf16 %v216, %v215
  %v221 = vpack.c.bf16 %v217, %v217
  %v224 = vunpack.c.l.b16 %v218
  %v225 = vunpack.c.l.b16 %v219
  %v226 = vpack.c.b16 %v225, %v224
  %vm227 = vcmask 195584
  %v229 = vsel %vm227, %v226, 0
  %vm231 = vcmask 1043456
  %v233 = vsel %vm231, %v221, 0
  %235 = vmatpush.bf16.msra.mxu0 0
  %236 = vmatpush.bf16.msra.mxu0 0
  %237 = vmatpush.bf16.msra.mxu0 0
  %238 = vmatpush.bf16.msra.mxu0 0
  %239 = vmatpush.bf16.msra.mxu0 0
  %240 = vmatpush.bf16.msra.mxu0 0
  %241 = vmatpush.bf16.msra.mxu0 %v233
  %242 = vmatpush.bf16.msra.mxu0 %v220
  %243 = vmatmul.bf16.gmra.mxu0 %v229
  %v244 = vpop.f32.mrf.mxu0
  %v245 = vadd.f32 0.0, %v244
  %v246 = vpop.f32.mrf.mxu0
  %v247 = vadd.f32 0.0, %v246
  %248 = vdwg.mxu0
  %v249 = vld [vmem:[%s11] sm:$0xff]
  %v250 = vld [vmem:[%s11 + $0x8] sm:$0xff]
  %252 = vset.pattern.permute.xlu0 0
  %253 = vperm.xlu0 %252, %v249
  %v254 = vpop.permute.xlu0 %253
  %257 = vset.pattern.permute.xlu0 0
  %258 = vperm.xlu0 %257, %v250
  %v259 = vpop.permute.xlu0 %258
  %v261 = vmul.f32 %v245, %v254
  %v262 = vmul.f32 %v247, %v259
  %v263 = vld [vmem:[%s12] sm:$0xff]
  %v264 = vld [vmem:[%s12 + $0x8] sm:$0xff]
  %266 = vset.pattern.permute.xlu0 0
  %267 = vperm.xlu0 %266, %v263
  %v268 = vpop.permute.xlu0 %267
  %271 = vset.pattern.permute.xlu0 0
  %272 = vperm.xlu0 %271, %v264
  %v273 = vpop.permute.xlu0 %272
  %v275 = vadd.f32 %v261, %v268
  %v276 = vadd.f32 %v262, %v273
  %v277 = vmax.f32 %v275, 0.0
  %v278 = vmax.f32 %v276, 0.0
  %v279 = vld [vmem:[%s13] sm:$0xf]
  %v280 = vpack.c.bf16 %v278, %v277
  %v281 = vld [vmem:[%s14] sm:$0xff]
  %283 = vset.pattern.permute.xlu0 0
  %284 = vperm.xlu0 %283, %v281
  %v285 = vpop.permute.xlu0 %284
  %v288 = vsel %vm97, %v279, 0
  %290 = vmatpush.bf16.msra.mxu0 0
  %291 = vmatpush.bf16.msra.mxu0 0
  %292 = vmatpush.bf16.msra.mxu0 0
  %293 = vmatpush.bf16.msra.mxu0 0
  %294 = vmatpush.bf16.msra.mxu0 0
  %295 = vmatpush.bf16.msra.mxu0 0
  %296 = vmatpush.bf16.msra.mxu0 0
  %297 = vmatpush.bf16.msra.mxu0 %v280
  %298 = vmatmul.bf16.gmra.mxu0 %v288
  %v299 = vpop.f32.mrf.mxu0
  %v300 = vadd.f32 %v285, %v299
  %v301 = vpop.f32.mrf.mxu0
  %302 = vdwg.mxu0
  %303 = vst [vmem:[#allocation2 + $0x18] sm:$0xff] %v300
  %v304 = vld [vmem:[#allocation2] sm:$0xff]
  %v305 = vld [vmem:[#allocation2 + $0x8] sm:$0xff]
  %v306 = vld [vmem:[#allocation2 + $0x10] sm:$0xff]
  %v307 = vld [vmem:[#allocation2 + $0x18] sm:$0xff]
  %v308 = vpack.c.bf16 %v304, %v304
  %v309 = vpack.c.bf16 %v305, %v305
  %v310 = vpack.c.bf16 %v306, %v306
  %v311 = vpack.c.bf16 %v307, %v307
  %312 = vst [vmem:[%s15] sm:$0xf] %v308
  %313 = vst [vmem:[%s15 + $0x4] sm:$0xf] %v309
  %314 = vst [vmem:[%s15 + $0x8] sm:$0xf] %v310
  %315 = vst [vmem:[%s15 + $0xc] sm:$0xf] %v311
  // Predicated region
  $region62: #{dense_net_forward.6} parent=0 // pred_check
    _
  $region63: #{dense_net_forward.6} parent=0 // pred_check_branch
    %317 = sbr.rel (0) target = $region65
  $region64: #{dense_net_forward.6} parent=0 // pred_region
    _
  $region65: #{dense_net_forward.6} parent=0 // pred_fallthru
    _
  // Predicated region
  $region66: #{dense_net_forward.6} parent=0 // pred_check
    _
  $region67: #{dense_net_forward.6} parent=0 // pred_check_branch
    %319 = sbr.rel (0) target = $region69
  $region68: #{dense_net_forward.6} parent=0 // pred_region
    _
  $region69: #{dense_net_forward.6} parent=0 // pred_fallthru
    _

// kernel: dense_net_forward.9
$region0: #{dense_net_forward.9}
  #allocation0 [shape = 'u32[]', space=smem, size = 0x4, offset = 0x4, fixed_abs, tag = 'smem constant byte address 0x4 - core index']
  #allocation1 [shape = 'u32[72,128]{1,0:T(1,128)}', space=vmem, size = 0x9000, scoped, tag = 'internal scratch']
  #allocation2 [shape = 'f32[32,2]{1,0:T(8,128)}', space=vmem, size = 0x4000, scoped, tag = 'scratch operand']
  %s0 = inlined_call_operand.vmem [shape: bf16[32,128], index: 0, kind: input, shape index: {}]
  %s1 = inlined_call_operand.vmem [shape: f32[32,1], index: 1, kind: input, shape index: {}]
  %s2 = inlined_call_operand.vmem [shape: f32[32,1], index: 2, kind: input, shape index: {}]
  %s3 = inlined_call_operand.vmem [shape: bf16[128,2], index: 3, kind: input, shape index: {}]
  %s4 = inlined_call_operand.vmem [shape: bf16[10,32], index: 4, kind: input, shape index: {}]
  %s5 = inlined_call_operand.vmem [shape: f32[10,1], index: 5, kind: input, shape index: {}]
  %s6 = inlined_call_operand.vmem [shape: f32[10,2], index: 6, kind: output, shape index: {}]
  %s7 = sld [smem:[#allocation0]]
  $region42: #{dense_net_forward.9} parent=0
    _
  %s9 = ssub.s32 1, %s7
  %s10 = scalar_select 0, %s9, %s7
  // Predicated region
  $region2: #{dense_net_forward.9} parent=0 // pred_check
    _
  $region3: #{dense_net_forward.9} parent=0 // pred_check_branch
    %12 = sbr.rel (0) target = $region5
  $region4: #{dense_net_forward.9} parent=0 // pred_region
    _
  $region5: #{dense_net_forward.9} parent=0 // pred_fallthru
    _
  // Predicated region
  $region6: #{dense_net_forward.9} parent=0 // pred_check
    _
  $region7: #{dense_net_forward.9} parent=0 // pred_check_branch
    %14 = sbr.rel (0) target = $region9
  $region8: #{dense_net_forward.9} parent=0 // pred_region
    _
  $region9: #{dense_net_forward.9} parent=0 // pred_fallthru
    _
  // Predicated region
  $region10: #{dense_net_forward.9} parent=0 // pred_check
    _
  $region11: #{dense_net_forward.9} parent=0 // pred_check_branch
    %16 = sbr.rel (0) target = $region13
  $region12: #{dense_net_forward.9} parent=0 // pred_region
    _
  $region13: #{dense_net_forward.9} parent=0 // pred_fallthru
    _
  // Predicated region
  $region14: #{dense_net_forward.9} parent=0 // pred_check
    _
  $region15: #{dense_net_forward.9} parent=0 // pred_check_branch
    %18 = sbr.rel (0) target = $region17
  $region16: #{dense_net_forward.9} parent=0 // pred_region
    _
  $region17: #{dense_net_forward.9} parent=0 // pred_fallthru
    _
  // Predicated region
  $region18: #{dense_net_forward.9} parent=0 // pred_check
    _
  $region19: #{dense_net_forward.9} parent=0 // pred_check_branch
    %20 = sbr.rel (0) target = $region21
  $region20: #{dense_net_forward.9} parent=0 // pred_region
    _
  $region21: #{dense_net_forward.9} parent=0 // pred_fallthru
    _
  // Predicated region
  $region22: #{dense_net_forward.9} parent=0 // pred_check
    _
  $region23: #{dense_net_forward.9} parent=0 // pred_check_branch
    %22 = sbr.rel (0) target = $region25
  $region24: #{dense_net_forward.9} parent=0 // pred_region
    _
  $region25: #{dense_net_forward.9} parent=0 // pred_fallthru
    _
  %p24 = scmp.eq.s32.totalorder 0, 0
  // Predicated region
  $region26: #{dense_net_forward.9} parent=0 // pred_check
    %p25 = pneg %p24
  $region27: #{dense_net_forward.9} parent=0 // pred_check_branch
    %27 = sbr.rel (%p25) target = $region29
  $region28: #{dense_net_forward.9} parent=0 // pred_region
    %vm28 = vcmask 15360
    %29 = vst.msk [vmem:[#allocation2] sm:$0xff] %vm28, 0.0
    %30 = vst.msk [vmem:[#allocation2 + $0x8] sm:$0xff] %vm28, 0.0
    %31 = vst.msk [vmem:[#allocation2 + $0x10] sm:$0xff] %vm28, 0.0
    %32 = vst.msk [vmem:[#allocation2 + $0x18] sm:$0xff] %vm28, 0.0
  $region29: #{dense_net_forward.9} parent=0 // pred_fallthru
    _
  %v33 = vld [vmem:[%s0] sm:$0xf]
  %v34 = vld [vmem:[%s0 + $0x4] sm:$0xf]
  %v35 = vld [vmem:[%s0 + $0x8] sm:$0xf]
  %v36 = vld [vmem:[%s0 + $0xc] sm:$0xf]
  %v37 = vunpack.c.l.bf16 %v33
  %v38 = vunpack.c.l.bf16 %v34
  %v39 = vunpack.c.l.bf16 %v35
  %v40 = vunpack.c.l.bf16 %v36
  %v41 = vld [vmem:[%s1] sm:$0xff]
  %v42 = vld [vmem:[%s1 + $0x8] sm:$0xff]
  %v43 = vld [vmem:[%s1 + $0x10] sm:$0xff]
  %v44 = vld [vmem:[%s1 + $0x18] sm:$0xff]
  %46 = vset.pattern.permute.xlu0 0
  %47 = vperm.xlu0 %46, %v41
  %v48 = vpop.permute.xlu0 %47
  %51 = vset.pattern.permute.xlu0 0
  %52 = vperm.xlu0 %51, %v42
  %v53 = vpop.permute.xlu0 %52
  %56 = vset.pattern.permute.xlu0 0
  %57 = vperm.xlu0 %56, %v43
  %v58 = vpop.permute.xlu0 %57
  %61 = vset.pattern.permute.xlu0 0
  %62 = vperm.xlu0 %61, %v44
  %v63 = vpop.permute.xlu0 %62
  %v65 = vmul.f32 %v37, %v48
  %v66 = vmul.f32 %v38, %v53
  %v67 = vmul.f32 %v39, %v58
  %v68 = vmul.f32 %v40, %v63
  %v69 = vld [vmem:[%s2] sm:$0xff]
  %v70 = vld [vmem:[%s2 + $0x8] sm:$0xff]
  %v71 = vld [vmem:[%s2 + $0x10] sm:$0xff]
  %v72 = vld [vmem:[%s2 + $0x18] sm:$0xff]
  %74 = vset.pattern.permute.xlu0 0
  %75 = vperm.xlu0 %74, %v69
  %v76 = vpop.permute.xlu0 %75
  %79 = vset.pattern.permute.xlu0 0
  %80 = vperm.xlu0 %79, %v70
  %v81 = vpop.permute.xlu0 %80
  %84 = vset.pattern.permute.xlu0 0
  %85 = vperm.xlu0 %84, %v71
  %v86 = vpop.permute.xlu0 %85
  %89 = vset.pattern.permute.xlu0 0
  %90 = vperm.xlu0 %89, %v72
  %v91 = vpop.permute.xlu0 %90
  %v93 = vadd.f32 %v65, %v76
  %v94 = vadd.f32 %v66, %v81
  %v95 = vadd.f32 %v67, %v86
  %v96 = vadd.f32 %v68, %v91
  %v97 = vmax.f32 %v93, 0.0
  %v98 = vmax.f32 %v94, 0.0
  %v99 = vmax.f32 %v95, 0.0
  %v100 = vmax.f32 %v96, 0.0
  %v101 = vld [vmem:[#allocation2] sm:$0xff]
  %v102 = vld [vmem:[#allocation2 + $0x8] sm:$0xff]
  %v103 = vld [vmem:[#allocation2 + $0x10] sm:$0xff]
  %v104 = vld [vmem:[#allocation2 + $0x18] sm:$0xff]
  %v105 = vpack.c.bf16 %v98, %v97
  %v106 = vpack.c.bf16 %v100, %v99
  %v107 = vld [vmem:[%s3] sm:$0xf]
  %v108 = vld [vmem:[%s3 + $0x4] sm:$0xf]
  %v109 = vld [vmem:[%s3 + $0x8] sm:$0xf]
  %v110 = vld [vmem:[%s3 + $0xc] sm:$0xf]
  %v111 = vld [vmem:[%s3 + $0x10] sm:$0xf]
  %v112 = vld [vmem:[%s3 + $0x14] sm:$0xf]
  %v113 = vld [vmem:[%s3 + $0x18] sm:$0xf]
  %v114 = vld [vmem:[%s3 + $0x1c] sm:$0xf]
  %v115 = vld [vmem:[%s3 + $0x20] sm:$0xf]
  %v116 = vld [vmem:[%s3 + $0x24] sm:$0xf]
  %v117 = vld [vmem:[%s3 + $0x28] sm:$0xf]
  %v118 = vld [vmem:[%s3 + $0x2c] sm:$0xf]
  %v119 = vld [vmem:[%s3 + $0x30] sm:$0xf]
  %v120 = vld [vmem:[%s3 + $0x34] sm:$0xf]
  %v121 = vld [vmem:[%s3 + $0x38] sm:$0xf]
  %v122 = vld [vmem:[%s3 + $0x3c] sm:$0xf]
  %v139 = vunpack.c.l.b16 %v107
  %v140 = vunpack.c.l.b16 %v108
  %v141 = vunpack.c.l.b16 %v109
  %v142 = vunpack.c.l.b16 %v110
  %v143 = vunpack.c.l.b16 %v111
  %v144 = vunpack.c.l.b16 %v112
  %v145 = vunpack.c.l.b16 %v113
  %v146 = vunpack.c.l.b16 %v114
  %v147 = vunpack.c.l.b16 %v115
  %v148 = vunpack.c.l.b16 %v116
  %v149 = vunpack.c.l.b16 %v117
  %v150 = vunpack.c.l.b16 %v118
  %v151 = vunpack.c.l.b16 %v119
  %v152 = vunpack.c.l.b16 %v120
  %v153 = vunpack.c.l.b16 %v121
  %v154 = vunpack.c.l.b16 %v122
  %v155 = vpack.c.b16 %v140, %v139
  %v156 = vpack.c.b16 %v142, %v141
  %v157 = vpack.c.b16 %v144, %v143
  %v158 = vpack.c.b16 %v146, %v145
  %v159 = vpack.c.b16 %v148, %v147
  %v160 = vpack.c.b16 %v150, %v149
  %v161 = vpack.c.b16 %v152, %v151
  %v162 = vpack.c.b16 %v154, %v153
  %171 = vmatpush.bf16.msra.mxu0 %v162
  %172 = vmatpush.bf16.msra.mxu0 %v161
  %173 = vmatpush.bf16.msra.mxu0 %v160
  %174 = vmatpush.bf16.msra.mxu0 %v159
  %175 = vmatpush.bf16.msra.mxu0 %v158
  %176 = vmatpush.bf16.msra.mxu0 %v157
  %177 = vmatpush.bf16.msra.mxu0 %v156
  %178 = vmatpush.bf16.msra.mxu0 %v155
  %179 = vmatmul.bf16.gmra.mxu0 %v105
  %v180 = vpop.f32.mrf.mxu0
  %v181 = vadd.f32 0.0, %v180
  %v182 = vpop.f32.mrf.mxu0
  %v183 = vadd.f32 0.0, %v182
  %184 = vmatmul.bf16.gmra.mxu0 %v106
  %v185 = vpop.f32.mrf.mxu0
  %v186 = vadd.f32 0.0, %v185
  %v187 = vpop.f32.mrf.mxu0
  %v188 = vadd.f32 0.0, %v187
  %189 = vdwg.mxu0
  %v190 = vadd.f32 %v101, %v181
  %v191 = vadd.f32 %v102, %v183
  %v192 = vadd.f32 %v103, %v186
  %v193 = vadd.f32 %v104, %v188
  %vm194 = vcmask 15360
  %195 = vst.msk [vmem:[#allocation2] sm:$0xff] %vm194, %v190
  %196 = vst.msk [vmem:[#allocation2 + $0x8] sm:$0xff] %vm194, %v191
  %197 = vst.msk [vmem:[#allocation2 + $0x10] sm:$0xff] %vm194, %v192
  %198 = vst.msk [vmem:[#allocation2 + $0x18] sm:$0xff] %vm194, %v193
  // Predicated region
  $region30: #{dense_net_forward.9} parent=0 // pred_check
    %p199 = pneg %p24
  $region31: #{dense_net_forward.9} parent=0 // pred_check_branch
    %201 = sbr.rel (%p199) target = $region33
  $region32: #{dense_net_forward.9} parent=0 // pred_region
    %v202 = vld [vmem:[#allocation2] sm:$0xff]
    %v203 = vld [vmem:[#allocation2 + $0x8] sm:$0xff]
    %v204 = vld [vmem:[#allocation2 + $0x10] sm:$0xff]
    %v205 = vld [vmem:[#allocation2 + $0x18] sm:$0xff]
    %v206 = vmul.f32 %v202, 0.04
    %v207 = vmul.f32 %v203, 0.04
    %v208 = vmul.f32 %v204, 0.04
    %v209 = vmul.f32 %v205, 0.04
    %v210 = vld [vmem:[%s4] sm:$0xf]
    %v211 = vld [vmem:[%s4 + $0x4] sm:$0x1]
    %v212 = vpack.c.bf16 %v207, %v206
    %v213 = vpack.c.bf16 %v209, %v208
    %v214 = vld [vmem:[%s5] sm:$0xff]
    %v215 = vld [vmem:[%s5 + $0x8] sm:$0x3]
    %217 = vset.pattern.permute.xlu0 0
    %218 = vperm.xlu0 %217, %v214
    %v219 = vpop.permute.xlu0 %218
    %222 = vset.pattern.permute.xlu0 0
    %223 = vperm.xlu0 %222, %v215
    %v224 = vpop.permute.xlu0 %223
    %v228 = vunpack.c.l.b16 %v210
    %v229 = vunpack.c.l.b16 %v211
    %v230 = vpack.c.b16 %v229, %v228
    %vm231 = vcmask 261120
    %v233 = vsel %vm231, %v230, 0
    %235 = vmatpush.bf16.msra.mxu0 0
    %236 = vmatpush.bf16.msra.mxu0 0
    %237 = vmatpush.bf16.msra.mxu0 0
    %238 = vmatpush.bf16.msra.mxu0 0
    %239 = vmatpush.bf16.msra.mxu0 0
    %240 = vmatpush.bf16.msra.mxu0 0
    %241 = vmatpush.bf16.msra.mxu0 %v213
    %242 = vmatpush.bf16.msra.mxu0 %v212
    %243 = vmatmul.bf16.gmra.mxu0 %v233
    %v244 = vpop.f32.mrf.mxu0
    %v245 = vadd.f32 %v219, %v244
    %v246 = vpop.f32.mrf.mxu0
    %v247 = vadd.f32 %v224, %v246
    %248 = vdwg.mxu0
    %249 = vst.msk [vmem:[%s6] sm:$0xff] %vm194, %v245
    %vm250 = vcmask 9216
    %251 = vst.msk [vmem:[%s6 + $0x8] sm:$0x3] %vm250, %v247
  $region33: #{dense_net_forward.9} parent=0 // pred_fallthru
    _
  // Predicated region
  $region34: #{dense_net_forward.9} parent=0 // pred_check
    _
  $region35: #{dense_net_forward.9} parent=0 // pred_check_branch
    %253 = sbr.rel (0) target = $region37
  $region36: #{dense_net_forward.9} parent=0 // pred_region
    _
  $region37: #{dense_net_forward.9} parent=0 // pred_fallthru
    _
  // Predicated region
  $region38: #{dense_net_forward.9} parent=0 // pred_check
    _
  $region39: #{dense_net_forward.9} parent=0 // pred_check_branch
    %255 = sbr.rel (0) target = $region41
  $region40: #{dense_net_forward.9} parent=0 // pred_region
    _
  $region41: #{dense_net_forward.9} parent=0 // pred_fallthru
    _

</llo_original>
